<compile_context>
chip_gen: v6e
topology: v6e:2x2x1
jax: 0.10.0
libtpu: 0.0.40
codegen_flags: <defaults>
</compile_context>

<pallas_src>
import functools

import jax
import jax.numpy as jnp
from jax import lax
from jax.experimental import pallas as pl
from jax.experimental.pallas import tpu as pltpu


# ------------------------------ small helpers --------------------------------

def _round_up(x, m):
    return ((x + m - 1) // m) * m


def _divisors(n):
    ds = set()
    i = 1
    while i * i <= n:
        if n % i == 0:
            ds.add(i)
            ds.add(n // i)
        i += 1
    return ds


def _vmem_limit_bytes():
    """Generation-aware scoped-VMEM request (v7x: 64 MiB/TC, v5e/v6e: 128 MiB)."""
    cap = 64 * 1024 * 1024
    try:
        cap = int(getattr(pltpu.get_tpu_info(), "vmem_capacity_bytes", cap))
    except Exception:
        pass
    return int(max(32 * 1024 * 1024, min(cap * 3 // 4, 100 * 1024 * 1024)))


def _pick_lane_tile(s, per_lane_bytes, vmem_limit, target_block_bytes=6 * 1024 * 1024):
    """Lane-tile for a (C, s) stream.

    Prefers a divisor of s that is a multiple of 128 (lane-dense, no padding) whose
    double-buffered working set stays within budget; else the full extent; padding is a
    rare last resort.  Returns (tile, padded_s).
    """
    budget = min(4 * target_block_bytes, vmem_limit // 2)
    cap = max(128, budget // max(2 * per_lane_bytes, 1))
    best = max((t for t in _divisors(s) if t % 128 == 0 and t <= cap), default=None)
    if best is not None:
        return best, s
    if s <= 2 * cap:                       # full extent is always a legal block dim
        return s, s
    sp = _round_up(s, 128)                 # rare fallback: pad, then tile lane-dense
    best = max((t for t in _divisors(sp) if t % 128 == 0 and t <= cap), default=128)
    return best, sp


# ------------------------------ Pallas kernels --------------------------------

def _conv_up_kernel(x_ref, w_ref, b_ref, o_ref):
    # x: (Cin, TS) spatial-on-lane, w: (Chalf, Cin), b: (Chalf, 1)
    x = x_ref[...].astype(jnp.float32)
    w = w_ref[...].astype(jnp.float32)
    y = jnp.dot(w, x, preferred_element_type=jnp.float32) + b_ref[...].astype(jnp.float32)
    o_ref[...] = y.astype(o_ref.dtype)


def conv_up_rows(x1f, w, b, vmem_limit):
    """1x1x1 conv_up on the pre-upsample tensor, channels-first (N,Cin,S1)->(N,Chalf,S1)."""
    n, cin, s1 = x1f.shape
    chalf = w.shape[0]
    ts, s1p = _pick_lane_tile(s1, 4 * (cin + chalf), vmem_limit)
    if s1p != s1:
        x1f = jnp.pad(x1f, ((0, 0), (0, 0), (0, s1p - s1)))
    out = pl.pallas_call(
        _conv_up_kernel,
        out_shape=jax.ShapeDtypeStruct((n, chalf, s1p), x1f.dtype),
        grid=(n, s1p // ts),
        in_specs=[pl.BlockSpec((None, cin, ts), lambda i, k: (i, 0, k)),
                  pl.BlockSpec((chalf, cin), lambda i, k: (0, 0)),
                  pl.BlockSpec((chalf, 1), lambda i, k: (0, 0))],
        out_specs=pl.BlockSpec((None, chalf, ts), lambda i, k: (i, 0, k)),
        compiler_params=pltpu.CompilerParams(
            dimension_semantics=("parallel", "parallel"),
            vmem_limit_bytes=vmem_limit),
    )(x1f, w, b)
    return out[:, :, :s1] if s1p != s1 else out


def _pool_kernel(x_ref, sum_ref, max_ref, *, ts, s_valid, masked):
    k = pl.program_id(2)

    @pl.when(k == 0)
    def _():
        sum_ref[...] = jnp.zeros_like(sum_ref)
        max_ref[...] = jnp.full_like(max_ref, -jnp.inf)

    x = x_ref[...].astype(jnp.float32)                       # (C, TS)
    if masked:                                               # only when S was padded (rare)
        p = pl.program_id(1)
        col = (p * pl.num_programs(2) + k) * ts + lax.broadcasted_iota(jnp.int32, x.shape, 1)
        valid = col < s_valid
        xs = jnp.where(valid, x, 0.0)
        xm = jnp.where(valid, x, -jnp.inf)
    else:
        xs = x
        xm = x
    sum_ref[...] += jnp.sum(xs, axis=1, keepdims=True)
    max_ref[...] = jnp.maximum(max_ref[...], jnp.max(xm, axis=1, keepdims=True))


def ica_pool(x2f, vmem_limit):
    """Global per-channel sum/max over space -> ((N, C) sum, (N, C) max), float32.

    Emits per-split partials along a 'parallel' axis so the reduction can be shared by
    v7x's two TensorCores; the tiny combine over splits happens in JAX glue.
    """
    n, c, s = x2f.shape
    ts, sp = _pick_lane_tile(s, 4 * c, vmem_limit)
    masked = sp != s
    if masked:
        x2f = jnp.pad(x2f, ((0, 0), (0, 0), (0, sp - s)))
    ks = sp // ts
    nsplit = 2 if ks % 2 == 0 else 1
    ksp = ks // nsplit

    kern = functools.partial(_pool_kernel, ts=ts, s_valid=s, masked=masked)
    psum, pmax = pl.pallas_call(
        kern,
        out_shape=(jax.ShapeDtypeStruct((n, nsplit, c, 1), jnp.float32),
                   jax.ShapeDtypeStruct((n, nsplit, c, 1), jnp.float32)),
        grid=(n, nsplit, ksp),
        in_specs=[pl.BlockSpec((None, c, ts), lambda b, p, k: (b, 0, p * ksp + k))],
        out_specs=(pl.BlockSpec((None, None, c, 1), lambda b, p, k: (b, p, 0, 0)),
                   pl.BlockSpec((None, None, c, 1), lambda b, p, k: (b, p, 0, 0))),
        compiler_params=pltpu.CompilerParams(
            dimension_semantics=("parallel", "parallel", "arbitrary"),
            vmem_limit_bytes=vmem_limit),
    )(x2f)
    return jnp.sum(psum, axis=1)[..., 0], jnp.max(pmax, axis=1)[..., 0]


def _fused_kernel(x2_ref, y1_ref, z_ref, c1w_ref, c1b_ref,
                  sa_ref, ba_ref, sb_ref, bb_ref,
                  wt_ref, wb_ref, bc_ref, o_ref):
    """Channel gate + spatial gate + [skip; up] concat + BN(eval) + LeakyReLU + 1x1 conv.

    All tiles are (C, TS): channels on sublanes, spatial (multiple of 128) on lanes, so
    every elementwise op and every store is lane-dense and both convs are MXU dots.
    """
    x2 = x2_ref[...].astype(jnp.float32)                # (Chalf, TS) skip rows
    y1 = y1_ref[...].astype(jnp.float32)                # (Chalf, TS) upsampled rows

    fuse = z_ref[...] * x2                              # channel-attention gate (Chalf,1)
    avg1 = jnp.mean(fuse, axis=0, keepdims=True)        # (1, TS) channel mean
    max1 = jnp.max(fuse, axis=0, keepdims=True)         # (1, TS) channel max
    # conv1: Conv3d(2, 1, 1) -> w0*mean + w1*max + b, then sigmoid (spatial gate)
    sc1 = jax.nn.sigmoid(avg1 * c1w_ref[0:1, 0:1] + max1 * c1w_ref[0:1, 1:2]
                         + c1b_ref[...])
    fuse1 = sc1 * fuse

    ha = fuse1 * sa_ref[...] + ba_ref[...]              # BN (skip half of the concat)
    ha = jnp.where(ha >= 0.0, ha, 0.01 * ha)            # LeakyReLU(0.01)
    hb = y1 * sb_ref[...] + bb_ref[...]                 # BN (upsampled half)
    hb = jnp.where(hb >= 0.0, hb, 0.01 * hb)

    # TODO(synk): on v5e, staging [ha; hb] into one (Cin, TS) scratch and doing a single
    # dot would halve MXU push/pop sequences; kept as two split-weight dots for clarity.
    y = (jnp.dot(wt_ref[...], ha, preferred_element_type=jnp.float32)
         + jnp.dot(wb_ref[...], hb, preferred_element_type=jnp.float32)
         + bc_ref[...])
    o_ref[...] = y.astype(o_ref.dtype)


def fused_attn_convsnp(x2f, y1f, z, p, vmem_limit):
    n, chalf, s = x2f.shape
    out_ch = p["wc_top"].shape[0]
    ts, sp = _pick_lane_tile(s, 4 * (2 * chalf + out_ch), vmem_limit)
    if sp != s:
        pad = ((0, 0), (0, 0), (0, sp - s))
        x2f = jnp.pad(x2f, pad)
        y1f = jnp.pad(y1f, pad)
    out = pl.pallas_call(
        _fused_kernel,
        out_shape=jax.ShapeDtypeStruct((n, out_ch, sp), x2f.dtype),
        grid=(n, sp // ts),
        in_specs=[
            pl.BlockSpec((None, chalf, ts), lambda b, k: (b, 0, k)),   # skip rows
            pl.BlockSpec((None, chalf, ts), lambda b, k: (b, 0, k)),   # upsampled rows
            pl.BlockSpec((None, chalf, 1), lambda b, k: (b, 0, 0)),    # channel gate z
            pl.BlockSpec((1, 2), lambda b, k: (0, 0)),                 # conv1 weight
            pl.BlockSpec((1, 1), lambda b, k: (0, 0)),                 # conv1 bias
            pl.BlockSpec((chalf, 1), lambda b, k: (0, 0)),             # bn scale (skip)
            pl.BlockSpec((chalf, 1), lambda b, k: (0, 0)),             # bn shift (skip)
            pl.BlockSpec((chalf, 1), lambda b, k: (0, 0)),             # bn scale (up)
            pl.BlockSpec((chalf, 1), lambda b, k: (0, 0)),             # bn shift (up)
            pl.BlockSpec((out_ch, chalf), lambda b, k: (0, 0)),        # Wc (skip half)
            pl.BlockSpec((out_ch, chalf), lambda b, k: (0, 0)),        # Wc (up half)
            pl.BlockSpec((out_ch, 1), lambda b, k: (0, 0)),            # conv bias
        ],
        out_specs=pl.BlockSpec((None, out_ch, ts), lambda b, k: (b, 0, k)),
        compiler_params=pltpu.CompilerParams(
            dimension_semantics=("parallel", "parallel"),
            vmem_limit_bytes=vmem_limit),
    )(x2f, y1f, z, p["c1w"], p["c1b"],
      p["bn_scale_a"], p["bn_shift_a"], p["bn_scale_b"], p["bn_shift_b"],
      p["wc_top"], p["wc_bot"], p["bc"])
    return out[:, :, :s] if sp != s else out


# --------------------------------- JAX glue -----------------------------------

def _upsample2x_axis(x, axis):
    # nn.Upsample(scale_factor=2, mode='trilinear'/'linear', align_corners=False) along
    # one axis: out[2k] = .75 x[k] + .25 x[k-1], out[2k+1] = .75 x[k] + .25 x[k+1],
    # edge-clamped exactly like PyTorch's source-index clamping.
    n = x.shape[axis]
    first = lax.slice_in_dim(x, 0, 1, axis=axis)
    last = lax.slice_in_dim(x, n - 1, n, axis=axis)
    xm = jnp.concatenate([first, lax.slice_in_dim(x, 0, n - 1, axis=axis)], axis=axis)
    xp = jnp.concatenate([lax.slice_in_dim(x, 1, n, axis=axis), last], axis=axis)
    even = 0.75 * x + 0.25 * xm
    odd = 0.75 * x + 0.25 * xp
    y = jnp.stack([even, odd], axis=axis + 1)
    shape = list(x.shape)
    shape[axis] = 2 * n
    return y.reshape(shape)


def up_forward(x1, x2, p):
    n, cin, d, h, w = x1.shape
    chalf = cin // 2
    d2, h2, w2 = 2 * d, 2 * h, 2 * w
    assert x2.shape == (n, chalf, d2, h2, w2)
    s = d2 * h2 * w2
    s1 = d * h * w
    vmem = _vmem_limit_bytes()
    out_ch = p["wc_top"].shape[0]

    # --- up branch: conv_up BEFORE the upsample (exactly commutes), channels-first.
    y1_pre = conv_up_rows(x1.reshape(n, cin, s1), p["wup"], p["bup"], vmem)   # (N,Chalf,S1)
    y1 = y1_pre.reshape(n, chalf, d, h, w)
    for ax in (2, 3, 4):                       # separable trilinear 2x (small tensor first)
        y1 = _upsample2x_axis(y1, ax)
    y1f = y1.reshape(n, chalf, s)

    # --- skip branch (ICA) pass 1: global per-channel avg/max pool (split-reduction).
    x2f = x2.reshape(n, chalf, s)
    ssum, smax = ica_pool(x2f, vmem)                                          # (N, Chalf)
    a = jax.nn.sigmoid(ssum / s)               # sigmoid on pooled values BEFORE fc1 (ICA)
    m = jax.nn.sigmoid(smax)
    hfc = jax.nn.relu(a @ p["w1a"] + m @ p["w1m"] + p["b1"])                  # Dropout = id
    z = jax.nn.sigmoid(hfc @ p["w2t"] + p["b2"])                              # (N, Chalf)
    z = z[:, :, None].astype(jnp.float32)

    # --- pass 2: gates + concat + BN + LeakyReLU + final 1x1 conv, one fused kernel.
    outf = fused_attn_convsnp(x2f, y1f, z, p, vmem)                           # (N,out_ch,S)
    return outf.reshape(n, out_ch, d2, h2, w2)


def init_params(key, in_ch, out_ch):
    chalf = in_ch // 2
    assert out_ch == chalf, "Up requires out_ch == in_ch // 2 for channel arithmetic"
    dmid = max(out_ch // 4, 8)  # d = max(inplanes / r, L) with r=4, L=8
    ks = jax.random.split(key, 14)

    # conv_up: Conv3d(in_ch, in_ch//2, 1)
    wup = 0.2 * jax.random.normal(ks[0], (chalf, in_ch), jnp.float32)
    bup = 0.1 * jax.random.normal(ks[1], (chalf, 1), jnp.float32)

    # ICA_block(out_ch): fc1 Linear(2C, d), fc2 Linear(d, C), conv1 Conv3d(2, 1, 1)
    w1 = 0.3 * jax.random.normal(ks[2], (dmid, 2 * out_ch), jnp.float32)
    b1 = 0.1 * jax.random.normal(ks[3], (1, dmid), jnp.float32)
    w2 = 0.3 * jax.random.normal(ks[4], (out_ch, dmid), jnp.float32)
    b2 = 0.1 * jax.random.normal(ks[5], (1, out_ch), jnp.float32)
    c1w = 0.5 * jax.random.normal(ks[6], (1, 2), jnp.float32)
    c1b = 0.1 * jax.random.normal(ks[7], (1, 1), jnp.float32)

    # ConvSNP(in_ch, out_ch): BatchNorm3d(in_ch) eval stats folded + Conv3d(in_ch, out_ch, 1)
    gamma = 1.0 + 0.1 * jax.random.normal(ks[8], (in_ch,), jnp.float32)
    beta = 0.1 * jax.random.normal(ks[9], (in_ch,), jnp.float32)
    rmean = 0.1 * jax.random.normal(ks[10], (in_ch,), jnp.float32)
    rvar = jax.random.uniform(ks[11], (in_ch,), jnp.float32, 0.5, 1.5)
    eps = 1e-5
    scale = gamma / jnp.sqrt(rvar + eps)
    shift = beta - rmean * scale
    wc = 0.2 * jax.random.normal(ks[12], (out_ch, in_ch), jnp.float32)
    bc = 0.1 * jax.random.normal(ks[13], (out_ch, 1), jnp.float32)

    return {
        "wup": wup, "bup": bup,
        "w1a": w1[:, :out_ch].T, "w1m": w1[:, out_ch:].T, "b1": b1,
        "w2t": w2.T, "b2": b2,
        "c1w": c1w, "c1b": c1b,
        # BN split to match cat([x2(skip), x1(up)]) channel order, channel-on-sublane.
        "bn_scale_a": scale[:chalf].reshape(chalf, 1),
        "bn_shift_a": shift[:chalf].reshape(chalf, 1),
        "bn_scale_b": scale[chalf:].reshape(chalf, 1),
        "bn_shift_b": shift[chalf:].reshape(chalf, 1),
        # final 1x1 conv (Wc @ act) split along the input-channel axis
        "wc_top": wc[:, :chalf], "wc_bot": wc[:, chalf:],
        "bc": bc,
    }


def _reference(x1, x2, p):
    """Pure-JAX reference in the original op order (upsample -> conv_up -> ...)."""
    n, cin, d, h, w = x1.shape
    chalf = cin // 2
    x1u = x1
    for ax in (2, 3, 4):
        x1u = _upsample2x_axis(x1u, ax)
    y1 = (jnp.einsum('oc,ncdhw->nodhw', p["wup"], x1u, precision='highest')
          + p["bup"].reshape(1, chalf, 1, 1, 1))
    avg = jnp.mean(x2, axis=(2, 3, 4))
    mx = jnp.max(x2, axis=(2, 3, 4))
    a = jax.nn.sigmoid(avg)
    m = jax.nn.sigmoid(mx)
    hfc = jax.nn.relu(a @ p["w1a"] + m @ p["w1m"] + p["b1"])
    z = jax.nn.sigmoid(hfc @ p["w2t"] + p["b2"])
    fuse = z[:, :, None, None, None] * x2
    avg1 = jnp.mean(fuse, axis=1, keepdims=True)
    max1 = jnp.max(fuse, axis=1, keepdims=True)
    sc1 = jax.nn.sigmoid(avg1 * p["c1w"][0, 0] + max1 * p["c1w"][0, 1] + p["c1b"][0, 0])
    fuse1 = sc1 * fuse
    xcat = jnp.concatenate([fuse1, y1], axis=1)
    scale = jnp.concatenate([p["bn_scale_a"], p["bn_scale_b"]], axis=0).reshape(1, cin, 1, 1, 1)
    shift = jnp.concatenate([p["bn_shift_a"], p["bn_shift_b"]], axis=0).reshape(1, cin, 1, 1, 1)
    xn = xcat * scale + shift
    xa = jnp.where(xn >= 0, xn, 0.01 * xn)
    wc = jnp.concatenate([p["wc_top"], p["wc_bot"]], axis=1)     # (out_ch, cin)
    return (jnp.einsum('ncdhw,oc->nodhw', xa, wc, precision='highest')
            + p["bc"].reshape(1, -1, 1, 1, 1))


if __name__ == "__main__":
    key = jax.random.PRNGKey(0)
    in_ch, out_ch = 8, 4
    n, d, h, w = 2, 4, 4, 4
    k1, k2, kp = jax.random.split(key, 3)
    x1 = jax.random.normal(k1, (n, in_ch, d, h, w), jnp.float32)
    x2 = jax.random.normal(k2, (n, out_ch, 2 * d, 2 * h, 2 * w), jnp.float32)
    params = init_params(kp, in_ch, out_ch)

    out = jax.jit(up_forward)(x1, x2, params)
    out = jax.block_until_ready(out)
    assert out.shape == (n, out_ch, 2 * d, 2 * h, 2 * w)
    assert bool(jnp.all(jnp.isfinite(out)))

    ref = _reference(x1, x2, params)
    err = float(jnp.max(jnp.abs(out - ref)))
    assert jnp.allclose(out, ref, atol=2e-3, rtol=2e-3), err
    print("KERNEL_OK")
</pallas_src>

<mosaic_0001>
module attributes {stable_mosaic.version = 11 : i64} {
  func.func @_conv_up_kernel(%arg0: i32, %arg1: i32, %arg2: memref<1x8x64xf32, #tpu.memory_space<vmem>>, %arg3: memref<4x8xf32, #tpu.memory_space<vmem>>, %arg4: memref<4x1xf32, #tpu.memory_space<vmem>>, %arg5: memref<1x4x64xf32, #tpu.memory_space<vmem>>) attributes {dimension_semantics = [#tpu.dimension_semantics<parallel>, #tpu.dimension_semantics<parallel>], iteration_bounds = array<i64: 2, 1>, scalar_prefetch = 0 : i64, scratch_operands = 0 : i64, tpu.core_type = #tpu.core_type<tc>, window_params = [{transform_indices = @transform_0, window_bounds = array<i64: 1, 8, 64>}, {pipeline_mode = #tpu.pipeline_mode<synchronous>, transform_indices = @transform_1, window_bounds = array<i64: 4, 8>}, {pipeline_mode = #tpu.pipeline_mode<synchronous>, transform_indices = @transform_2, window_bounds = array<i64: 4, 1>}, {transform_indices = @transform_3, window_bounds = array<i64: 1, 4, 64>}]} {
    %c0 = arith.constant 0 : index
    %c0_0 = arith.constant 0 : index
    %c0_1 = arith.constant 0 : index
    %0 = vector.load %arg2[%c0, %c0_0, %c0_1] : memref<1x8x64xf32, #tpu.memory_space<vmem>>, vector<1x8x64xf32>
    %1 = vector.shape_cast %0 : vector<1x8x64xf32> to vector<8x64xf32>
    %c0_2 = arith.constant 0 : index
    %c0_3 = arith.constant 0 : index
    %2 = vector.load %arg3[%c0_2, %c0_3] : memref<4x8xf32, #tpu.memory_space<vmem>>, vector<4x8xf32>
    %cst = arith.constant dense<0.000000e+00> : vector<4x64xf32>
    %3 = tpu.matmul %2, %1, %cst {dimension_numbers = #tpu.dot_dimension_numbers<[1], [0], [0], [1], [0, 0, 1, 1], [], []>} : vector<4x8xf32>, vector<8x64xf32>, vector<4x64xf32> -> vector<4x64xf32>
    %c0_4 = arith.constant 0 : index
    %c0_5 = arith.constant 0 : index
    %4 = vector.load %arg4[%c0_4, %c0_5] : memref<4x1xf32, #tpu.memory_space<vmem>>, vector<4x1xf32>
    %5 = vector.broadcast %4 : vector<4x1xf32> to vector<4x64xf32>
    %6 = arith.addf %3, %5 : vector<4x64xf32>
    %c0_6 = arith.constant 0 : index
    %c0_7 = arith.constant 0 : index
    %c0_8 = arith.constant 0 : index
    %7 = vector.load %arg5[%c0_6, %c0_7, %c0_8] : memref<1x4x64xf32, #tpu.memory_space<vmem>>, vector<1x4x64xf32>
    %8 = vector.shape_cast %7 : vector<1x4x64xf32> to vector<4x64xf32>
    %9 = vector.shape_cast %6 : vector<4x64xf32> to vector<1x4x64xf32>
    tpu.vector_store %arg5[%c0_6, %c0_7, %c0_8], %9 {strides = array<i32>} : memref<1x4x64xf32, #tpu.memory_space<vmem>>, vector<1x4x64xf32>,
    return
  }
  func.func @transform_0(%arg0: i32, %arg1: i32) -> (i32, i32, i32) {
    %c0_i32 = arith.constant 0 : i32
    %c0_i32_0 = arith.constant 0 : i32
    return %arg0, %c0_i32, %arg1 : i32, i32, i32
  }
  func.func @transform_1(%arg0: i32, %arg1: i32) -> (i32, i32) {
    %c0_i32 = arith.constant 0 : i32
    %c0_i32_0 = arith.constant 0 : i32
    %c0_i32_1 = arith.constant 0 : i32
    return %c0_i32, %c0_i32_0 : i32, i32
  }
  func.func @transform_2(%arg0: i32, %arg1: i32) -> (i32, i32) {
    %c0_i32 = arith.constant 0 : i32
    %c0_i32_0 = arith.constant 0 : i32
    %c0_i32_1 = arith.constant 0 : i32
    return %c0_i32, %c0_i32_0 : i32, i32
  }
  func.func @transform_3(%arg0: i32, %arg1: i32) -> (i32, i32, i32) {
    %c0_i32 = arith.constant 0 : i32
    %c0_i32_0 = arith.constant 0 : i32
    return %arg0, %c0_i32, %arg1 : i32, i32, i32
  }
}

module attributes {stable_mosaic.version = 11 : i64} {
  func.func @_pool_kernel(%arg0: i32, %arg1: i32, %arg2: i32, %arg3: memref<1x4x512xf32, #tpu.memory_space<vmem>>, %arg4: memref<1x1x4x1xf32, #tpu.memory_space<vmem>>, %arg5: memref<1x1x4x1xf32, #tpu.memory_space<vmem>>) attributes {dimension_semantics = [#tpu.dimension_semantics<parallel>, #tpu.dimension_semantics<parallel>, #tpu.dimension_semantics<arbitrary>], iteration_bounds = array<i64: 2, 1, 1>, scalar_prefetch = 0 : i64, scratch_operands = 0 : i64, tpu.core_type = #tpu.core_type<tc>, window_params = [{transform_indices = @transform_0, window_bounds = array<i64: 1, 4, 512>}, {transform_indices = @transform_1, window_bounds = array<i64: 1, 1, 4, 1>}, {transform_indices = @transform_2, window_bounds = array<i64: 1, 1, 4, 1>}]} {
    %c0_i32 = arith.constant 0 : i32
    %0 = arith.cmpi eq, %arg2, %c0_i32 : i32
    %1 = arith.extui %0 : i1 to i32
    %c0_i32_0 = arith.constant 0 : i32
    %2 = arith.cmpi ne, %1, %c0_i32_0 : i32
    scf.if %2 {
      %cst_20 = arith.constant 0.000000e+00 : f32
      %21 = vector.broadcast %cst_20 : f32 to vector<4x1xf32>
      %c0_21 = arith.constant 0 : index
      %c0_22 = arith.constant 0 : index
      %c0_23 = arith.constant 0 : index
      %c0_24 = arith.constant 0 : index
      %22 = vector.load %arg4[%c0_21, %c0_22, %c0_23, %c0_24] : memref<1x1x4x1xf32, #tpu.memory_space<vmem>>, vector<1x1x4x1xf32>
      %23 = vector.shape_cast %22 : vector<1x1x4x1xf32> to vector<4x1xf32>
      %24 = vector.shape_cast %21 : vector<4x1xf32> to vector<1x1x4x1xf32>
      tpu.vector_store %arg4[%c0_21, %c0_22, %c0_23, %c0_24], %24 {strides = array<i32>} : memref<1x1x4x1xf32, #tpu.memory_space<vmem>>, vector<1x1x4x1xf32>,
      %cst_25 = arith.constant 0xFF800000 : f32
      %25 = vector.broadcast %cst_25 : f32 to vector<4x1xf32>
      %c0_26 = arith.constant 0 : index
      %c0_27 = arith.constant 0 : index
      %c0_28 = arith.constant 0 : index
      %c0_29 = arith.constant 0 : index
      %26 = vector.load %arg5[%c0_26, %c0_27, %c0_28, %c0_29] : memref<1x1x4x1xf32, #tpu.memory_space<vmem>>, vector<1x1x4x1xf32>
      %27 = vector.shape_cast %26 : vector<1x1x4x1xf32> to vector<4x1xf32>
      %28 = vector.shape_cast %25 : vector<4x1xf32> to vector<1x1x4x1xf32>
      tpu.vector_store %arg5[%c0_26, %c0_27, %c0_28, %c0_29], %28 {strides = array<i32>} : memref<1x1x4x1xf32, #tpu.memory_space<vmem>>, vector<1x1x4x1xf32>,
    } else {
    }
    %c0 = arith.constant 0 : index
    %c0_1 = arith.constant 0 : index
    %c0_2 = arith.constant 0 : index
    %3 = vector.load %arg3[%c0, %c0_1, %c0_2] : memref<1x4x512xf32, #tpu.memory_space<vmem>>, vector<1x4x512xf32>
    %4 = vector.shape_cast %3 : vector<1x4x512xf32> to vector<4x512xf32>
    %c0_3 = arith.constant 0 : index
    %c0_4 = arith.constant 0 : index
    %c0_5 = arith.constant 0 : index
    %c0_6 = arith.constant 0 : index
    %5 = vector.load %arg4[%c0_3, %c0_4, %c0_5, %c0_6] : memref<1x1x4x1xf32, #tpu.memory_space<vmem>>, vector<1x1x4x1xf32>
    %6 = vector.shape_cast %5 : vector<1x1x4x1xf32> to vector<4x1xf32>
    %cst = arith.constant dense<0.000000e+00> : vector<4xf32>
    %7 = vector.multi_reduction <add>, %4, %cst [1] : vector<4x512xf32> to vector<4xf32>
    %8 = vector.shape_cast %7 : vector<4xf32> to vector<4x1xf32>
    %9 = arith.addf %6, %8 : vector<4x1xf32>
    %c0_7 = arith.constant 0 : index
    %c0_8 = arith.constant 0 : index
    %c0_9 = arith.constant 0 : index
    %c0_10 = arith.constant 0 : index
    %10 = vector.load %arg4[%c0_7, %c0_8, %c0_9, %c0_10] : memref<1x1x4x1xf32, #tpu.memory_space<vmem>>, vector<1x1x4x1xf32>
    %11 = vector.shape_cast %10 : vector<1x1x4x1xf32> to vector<4x1xf32>
    %12 = vector.shape_cast %9 : vector<4x1xf32> to vector<1x1x4x1xf32>
    tpu.vector_store %arg4[%c0_7, %c0_8, %c0_9, %c0_10], %12 {strides = array<i32>} : memref<1x1x4x1xf32, #tpu.memory_space<vmem>>, vector<1x1x4x1xf32>,
    %c0_11 = arith.constant 0 : index
    %c0_12 = arith.constant 0 : index
    %c0_13 = arith.constant 0 : index
    %c0_14 = arith.constant 0 : index
    %13 = vector.load %arg5[%c0_11, %c0_12, %c0_13, %c0_14] : memref<1x1x4x1xf32, #tpu.memory_space<vmem>>, vector<1x1x4x1xf32>
    %14 = vector.shape_cast %13 : vector<1x1x4x1xf32> to vector<4x1xf32>
    %cst_15 = arith.constant dense<0xFF800000> : vector<4xf32>
    %15 = vector.multi_reduction <maximumf>, %4, %cst_15 [1] : vector<4x512xf32> to vector<4xf32>
    %16 = vector.shape_cast %15 : vector<4xf32> to vector<4x1xf32>
    %17 = arith.maximumf %14, %16 : vector<4x1xf32>
    %c0_16 = arith.constant 0 : index
    %c0_17 = arith.constant 0 : index
    %c0_18 = arith.constant 0 : index
    %c0_19 = arith.constant 0 : index
    %18 = vector.load %arg5[%c0_16, %c0_17, %c0_18, %c0_19] : memref<1x1x4x1xf32, #tpu.memory_space<vmem>>, vector<1x1x4x1xf32>
    %19 = vector.shape_cast %18 : vector<1x1x4x1xf32> to vector<4x1xf32>
    %20 = vector.shape_cast %17 : vector<4x1xf32> to vector<1x1x4x1xf32>
    tpu.vector_store %arg5[%c0_16, %c0_17, %c0_18, %c0_19], %20 {strides = array<i32>} : memref<1x1x4x1xf32, #tpu.memory_space<vmem>>, vector<1x1x4x1xf32>,
    return
  }
  func.func @transform_0(%arg0: i32, %arg1: i32, %arg2: i32) -> (i32, i32, i32) {
    %c1_i32 = arith.constant 1 : i32
    %0 = arith.muli %arg1, %c1_i32 : i32
    %1 = arith.addi %0, %arg2 : i32
    %c0_i32 = arith.constant 0 : i32
    %c0_i32_0 = arith.constant 0 : i32
    return %arg0, %c0_i32, %1 : i32, i32, i32
  }
  func.func @transform_1(%arg0: i32, %arg1: i32, %arg2: i32) -> (i32, i32, i32, i32) {
    %c0_i32 = arith.constant 0 : i32
    %c0_i32_0 = arith.constant 0 : i32
    %c0_i32_1 = arith.constant 0 : i32
    return %arg0, %arg1, %c0_i32, %c0_i32_0 : i32, i32, i32, i32
  }
  func.func @transform_2(%arg0: i32, %arg1: i32, %arg2: i32) -> (i32, i32, i32, i32) {
    %c0_i32 = arith.constant 0 : i32
    %c0_i32_0 = arith.constant 0 : i32
    %c0_i32_1 = arith.constant 0 : i32
    return %arg0, %arg1, %c0_i32, %c0_i32_0 : i32, i32, i32, i32
  }
}

module attributes {stable_mosaic.version = 11 : i64} {
  func.func @_fused_kernel(%arg0: i32, %arg1: i32, %arg2: memref<1x4x512xf32, #tpu.memory_space<vmem>>, %arg3: memref<1x4x512xf32, #tpu.memory_space<vmem>>, %arg4: memref<1x4x1xf32, #tpu.memory_space<vmem>>, %arg5: memref<1x2xf32, #tpu.memory_space<vmem>>, %arg6: memref<1x1xf32, #tpu.memory_space<vmem>>, %arg7: memref<4x1xf32, #tpu.memory_space<vmem>>, %arg8: memref<4x1xf32, #tpu.memory_space<vmem>>, %arg9: memref<4x1xf32, #tpu.memory_space<vmem>>, %arg10: memref<4x1xf32, #tpu.memory_space<vmem>>, %arg11: memref<4x4xf32, #tpu.memory_space<vmem>>, %arg12: memref<4x4xf32, #tpu.memory_space<vmem>>, %arg13: memref<4x1xf32, #tpu.memory_space<vmem>>, %arg14: memref<1x4x512xf32, #tpu.memory_space<vmem>>) attributes {dimension_semantics = [#tpu.dimension_semantics<parallel>, #tpu.dimension_semantics<parallel>], iteration_bounds = array<i64: 2, 1>, scalar_prefetch = 0 : i64, scratch_operands = 0 : i64, tpu.core_type = #tpu.core_type<tc>, window_params = [{transform_indices = @transform_0, window_bounds = array<i64: 1, 4, 512>}, {transform_indices = @transform_1, window_bounds = array<i64: 1, 4, 512>}, {transform_indices = @transform_2, window_bounds = array<i64: 1, 4, 1>}, {pipeline_mode = #tpu.pipeline_mode<synchronous>, transform_indices = @transform_3, window_bounds = array<i64: 1, 2>}, {pipeline_mode = #tpu.pipeline_mode<synchronous>, transform_indices = @transform_4, window_bounds = array<i64: 1, 1>}, {pipeline_mode = #tpu.pipeline_mode<synchronous>, transform_indices = @transform_5, window_bounds = array<i64: 4, 1>}, {pipeline_mode = #tpu.pipeline_mode<synchronous>, transform_indices = @transform_6, window_bounds = array<i64: 4, 1>}, {pipeline_mode = #tpu.pipeline_mode<synchronous>, transform_indices = @transform_7, window_bounds = array<i64: 4, 1>}, {pipeline_mode = #tpu.pipeline_mode<synchronous>, transform_indices = @transform_8, window_bounds = array<i64: 4, 1>}, {pipeline_mode = #tpu.pipeline_mode<synchronous>, transform_indices = @transform_9, window_bounds = array<i64: 4, 4>}, {pipeline_mode = #tpu.pipeline_mode<synchronous>, transform_indices = @transform_10, window_bounds = array<i64: 4, 4>}, {pipeline_mode = #tpu.pipeline_mode<synchronous>, transform_indices = @transform_11, window_bounds = array<i64: 4, 1>}, {transform_indices = @transform_12, window_bounds = array<i64: 1, 4, 512>}]} {
    %c0 = arith.constant 0 : index
    %c0_0 = arith.constant 0 : index
    %c0_1 = arith.constant 0 : index
    %0 = vector.load %arg2[%c0, %c0_0, %c0_1] : memref<1x4x512xf32, #tpu.memory_space<vmem>>, vector<1x4x512xf32>
    %1 = vector.shape_cast %0 : vector<1x4x512xf32> to vector<4x512xf32>
    %c0_2 = arith.constant 0 : index
    %c0_3 = arith.constant 0 : index
    %c0_4 = arith.constant 0 : index
    %2 = vector.load %arg3[%c0_2, %c0_3, %c0_4] : memref<1x4x512xf32, #tpu.memory_space<vmem>>, vector<1x4x512xf32>
    %3 = vector.shape_cast %2 : vector<1x4x512xf32> to vector<4x512xf32>
    %c0_5 = arith.constant 0 : index
    %c0_6 = arith.constant 0 : index
    %c0_7 = arith.constant 0 : index
    %4 = vector.load %arg4[%c0_5, %c0_6, %c0_7] : memref<1x4x1xf32, #tpu.memory_space<vmem>>, vector<1x4x1xf32>
    %5 = vector.shape_cast %4 : vector<1x4x1xf32> to vector<4x1xf32>
    %6 = vector.broadcast %5 : vector<4x1xf32> to vector<4x512xf32>
    %7 = arith.mulf %6, %1 : vector<4x512xf32>
    %cst = arith.constant dense<0.000000e+00> : vector<512xf32>
    %8 = vector.multi_reduction <add>, %7, %cst [0] : vector<4x512xf32> to vector<512xf32>
    %9 = vector.shape_cast %8 : vector<512xf32> to vector<1x512xf32>
    %cst_8 = arith.constant 4.000000e+00 : f32
    %10 = vector.broadcast %cst_8 : f32 to vector<1x512xf32>
    %11 = arith.divf %9, %10 : vector<1x512xf32>
    %cst_9 = arith.constant dense<0xFF800000> : vector<512xf32>
    %12 = vector.multi_reduction <maximumf>, %7, %cst_9 [0] : vector<4x512xf32> to vector<512xf32>
    %13 = vector.shape_cast %12 : vector<512xf32> to vector<1x512xf32>
    %c0_10 = arith.constant 0 : index
    %c0_11 = arith.constant 0 : index
    %14 = vector.load %arg5[%c0_10, %c0_11] : memref<1x2xf32, #tpu.memory_space<vmem>>, vector<1x1xf32>
    %15 = vector.broadcast %14 : vector<1x1xf32> to vector<1x512xf32>
    %16 = arith.mulf %11, %15 : vector<1x512xf32>
    %c0_12 = arith.constant 0 : index
    %c1 = arith.constant 1 : index
    %17 = vector.load %arg5[%c0_12, %c1] : memref<1x2xf32, #tpu.memory_space<vmem>>, vector<1x1xf32>
    %18 = vector.broadcast %17 : vector<1x1xf32> to vector<1x512xf32>
    %19 = arith.mulf %13, %18 : vector<1x512xf32>
    %20 = arith.addf %16, %19 : vector<1x512xf32>
    %c0_13 = arith.constant 0 : index
    %c0_14 = arith.constant 0 : index
    %21 = vector.load %arg6[%c0_13, %c0_14] : memref<1x1xf32, #tpu.memory_space<vmem>>, vector<1x1xf32>
    %22 = vector.broadcast %21 : vector<1x1xf32> to vector<1x512xf32>
    %23 = arith.addf %20, %22 : vector<1x512xf32>
    %24 = arith.negf %23 : vector<1x512xf32>
    %25 = math.exp %24 : vector<1x512xf32>
    %cst_15 = arith.constant 1.000000e+00 : f32
    %26 = vector.broadcast %cst_15 : f32 to vector<1x512xf32>
    %27 = arith.addf %26, %25 : vector<1x512xf32>
    %28 = arith.divf %26, %27 : vector<1x512xf32>
    %29 = vector.broadcast %28 : vector<1x512xf32> to vector<4x512xf32>
    %30 = arith.mulf %29, %7 : vector<4x512xf32>
    %c0_16 = arith.constant 0 : index
    %c0_17 = arith.constant 0 : index
    %31 = vector.load %arg7[%c0_16, %c0_17] : memref<4x1xf32, #tpu.memory_space<vmem>>, vector<4x1xf32>
    %32 = vector.broadcast %31 : vector<4x1xf32> to vector<4x512xf32>
    %33 = arith.mulf %30, %32 : vector<4x512xf32>
    %c0_18 = arith.constant 0 : index
    %c0_19 = arith.constant 0 : index
    %34 = vector.load %arg8[%c0_18, %c0_19] : memref<4x1xf32, #tpu.memory_space<vmem>>, vector<4x1xf32>
    %35 = vector.broadcast %34 : vector<4x1xf32> to vector<4x512xf32>
    %36 = arith.addf %33, %35 : vector<4x512xf32>
    %cst_20 = arith.constant 0.000000e+00 : f32
    %37 = vector.broadcast %cst_20 : f32 to vector<4x512xf32>
    %38 = arith.cmpf oge, %36, %37 : vector<4x512xf32>
    %cst_21 = arith.constant 0.00999999977 : f32
    %39 = vector.broadcast %cst_21 : f32 to vector<4x512xf32>
    %40 = arith.mulf %39, %36 : vector<4x512xf32>
    %41 = arith.select %38, %36, %40 : vector<4x512xi1>, vector<4x512xf32>
    %c0_22 = arith.constant 0 : index
    %c0_23 = arith.constant 0 : index
    %42 = vector.load %arg9[%c0_22, %c0_23] : memref<4x1xf32, #tpu.memory_space<vmem>>, vector<4x1xf32>
    %43 = vector.broadcast %42 : vector<4x1xf32> to vector<4x512xf32>
    %44 = arith.mulf %3, %43 : vector<4x512xf32>
    %c0_24 = arith.constant 0 : index
    %c0_25 = arith.constant 0 : index
    %45 = vector.load %arg10[%c0_24, %c0_25] : memref<4x1xf32, #tpu.memory_space<vmem>>, vector<4x1xf32>
    %46 = vector.broadcast %45 : vector<4x1xf32> to vector<4x512xf32>
    %47 = arith.addf %44, %46 : vector<4x512xf32>
    %cst_26 = arith.constant 0.000000e+00 : f32
    %48 = vector.broadcast %cst_26 : f32 to vector<4x512xf32>
    %49 = arith.cmpf oge, %47, %48 : vector<4x512xf32>
    %cst_27 = arith.constant 0.00999999977 : f32
    %50 = vector.broadcast %cst_27 : f32 to vector<4x512xf32>
    %51 = arith.mulf %50, %47 : vector<4x512xf32>
    %52 = arith.select %49, %47, %51 : vector<4x512xi1>, vector<4x512xf32>
    %c0_28 = arith.constant 0 : index
    %c0_29 = arith.constant 0 : index
    %53 = vector.load %arg11[%c0_28, %c0_29] : memref<4x4xf32, #tpu.memory_space<vmem>>, vector<4x4xf32>
    %cst_30 = arith.constant dense<0.000000e+00> : vector<4x512xf32>
    %54 = tpu.matmul %53, %41, %cst_30 {dimension_numbers = #tpu.dot_dimension_numbers<[1], [0], [0], [1], [0, 0, 1, 1], [], []>} : vector<4x4xf32>, vector<4x512xf32>, vector<4x512xf32> -> vector<4x512xf32>
    %c0_31 = arith.constant 0 : index
    %c0_32 = arith.constant 0 : index
    %55 = vector.load %arg12[%c0_31, %c0_32] : memref<4x4xf32, #tpu.memory_space<vmem>>, vector<4x4xf32>
    %cst_33 = arith.constant dense<0.000000e+00> : vector<4x512xf32>
    %56 = tpu.matmul %55, %52, %cst_33 {dimension_numbers = #tpu.dot_dimension_numbers<[1], [0], [0], [1], [0, 0, 1, 1], [], []>} : vector<4x4xf32>, vector<4x512xf32>, vector<4x512xf32> -> vector<4x512xf32>
    %57 = arith.addf %54, %56 : vector<4x512xf32>
    %c0_34 = arith.constant 0 : index
    %c0_35 = arith.constant 0 : index
    %58 = vector.load %arg13[%c0_34, %c0_35] : memref<4x1xf32, #tpu.memory_space<vmem>>, vector<4x1xf32>
    %59 = vector.broadcast %58 : vector<4x1xf32> to vector<4x512xf32>
    %60 = arith.addf %57, %59 : vector<4x512xf32>
    %c0_36 = arith.constant 0 : index
    %c0_37 = arith.constant 0 : index
    %c0_38 = arith.constant 0 : index
    %61 = vector.load %arg14[%c0_36, %c0_37, %c0_38] : memref<1x4x512xf32, #tpu.memory_space<vmem>>, vector<1x4x512xf32>
    %62 = vector.shape_cast %61 : vector<1x4x512xf32> to vector<4x512xf32>
    %63 = vector.shape_cast %60 : vector<4x512xf32> to vector<1x4x512xf32>
    tpu.vector_store %arg14[%c0_36, %c0_37, %c0_38], %63 {strides = array<i32>} : memref<1x4x512xf32, #tpu.memory_space<vmem>>, vector<1x4x512xf32>,
    return
  }
  func.func @transform_0(%arg0: i32, %arg1: i32) -> (i32, i32, i32) {
    %c0_i32 = arith.constant 0 : i32
    %c0_i32_0 = arith.constant 0 : i32
    return %arg0, %c0_i32, %arg1 : i32, i32, i32
  }
  func.func @transform_1(%arg0: i32, %arg1: i32) -> (i32, i32, i32) {
    %c0_i32 = arith.constant 0 : i32
    %c0_i32_0 = arith.constant 0 : i32
    return %arg0, %c0_i32, %arg1 : i32, i32, i32
  }
  func.func @transform_2(%arg0: i32, %arg1: i32) -> (i32, i32, i32) {
    %c0_i32 = arith.constant 0 : i32
    %c0_i32_0 = arith.constant 0 : i32
    %c0_i32_1 = arith.constant 0 : i32
    return %arg0, %c0_i32, %c0_i32_0 : i32, i32, i32
  }
  func.func @transform_3(%arg0: i32, %arg1: i32) -> (i32, i32) {
    %c0_i32 = arith.constant 0 : i32
    %c0_i32_0 = arith.constant 0 : i32
    %c0_i32_1 = arith.constant 0 : i32
    return %c0_i32, %c0_i32_0 : i32, i32
  }
  func.func @transform_4(%arg0: i32, %arg1: i32) -> (i32, i32) {
    %c0_i32 = arith.constant 0 : i32
    %c0_i32_0 = arith.constant 0 : i32
    %c0_i32_1 = arith.constant 0 : i32
    return %c0_i32, %c0_i32_0 : i32, i32
  }
  func.func @transform_5(%arg0: i32, %arg1: i32) -> (i32, i32) {
    %c0_i32 = arith.constant 0 : i32
    %c0_i32_0 = arith.constant 0 : i32
    %c0_i32_1 = arith.constant 0 : i32
    return %c0_i32, %c0_i32_0 : i32, i32
  }
  func.func @transform_6(%arg0: i32, %arg1: i32) -> (i32, i32) {
    %c0_i32 = arith.constant 0 : i32
    %c0_i32_0 = arith.constant 0 : i32
    %c0_i32_1 = arith.constant 0 : i32
    return %c0_i32, %c0_i32_0 : i32, i32
  }
  func.func @transform_7(%arg0: i32, %arg1: i32) -> (i32, i32) {
    %c0_i32 = arith.constant 0 : i32
    %c0_i32_0 = arith.constant 0 : i32
    %c0_i32_1 = arith.constant 0 : i32
    return %c0_i32, %c0_i32_0 : i32, i32
  }
  func.func @transform_8(%arg0: i32, %arg1: i32) -> (i32, i32) {
    %c0_i32 = arith.constant 0 : i32
    %c0_i32_0 = arith.constant 0 : i32
    %c0_i32_1 = arith.constant 0 : i32
    return %c0_i32, %c0_i32_0 : i32, i32
  }
  func.func @transform_9(%arg0: i32, %arg1: i32) -> (i32, i32) {
    %c0_i32 = arith.constant 0 : i32
    %c0_i32_0 = arith.constant 0 : i32
    %c0_i32_1 = arith.constant 0 : i32
    return %c0_i32, %c0_i32_0 : i32, i32
  }
  func.func @transform_10(%arg0: i32, %arg1: i32) -> (i32, i32) {
    %c0_i32 = arith.constant 0 : i32
    %c0_i32_0 = arith.constant 0 : i32
    %c0_i32_1 = arith.constant 0 : i32
    return %c0_i32, %c0_i32_0 : i32, i32
  }
  func.func @transform_11(%arg0: i32, %arg1: i32) -> (i32, i32) {
    %c0_i32 = arith.constant 0 : i32
    %c0_i32_0 = arith.constant 0 : i32
    %c0_i32_1 = arith.constant 0 : i32
    return %c0_i32, %c0_i32_0 : i32, i32
  }
  func.func @transform_12(%arg0: i32, %arg1: i32) -> (i32, i32, i32) {
    %c0_i32 = arith.constant 0 : i32
    %c0_i32_0 = arith.constant 0 : i32
    return %arg0, %c0_i32, %arg1 : i32, i32, i32
  }
}

</mosaic_0001>

<llo_original>
// kernel: up_forward.3
$region0: #{up_forward.3}
  #allocation0 [shape = 'u32[]', space=smem, size = 0x4, offset = 0x4, fixed_abs, tag = 'smem constant byte address 0x4 - core index']
  #allocation1 [shape = 'u32[144,128]{1,0:T(1,128)}', space=vmem, size = 0x12000, scoped, tag = 'internal scratch']
  %s0 = inlined_call_operand.vmem [shape: f32[2,8,64], index: 0, kind: input, shape index: {}]
  %s1 = inlined_call_operand.vmem [shape: f32[4,8], index: 1, kind: input, shape index: {}]
  %s2 = inlined_call_operand.vmem [shape: f32[4,1], index: 2, kind: input, shape index: {}]
  %s3 = inlined_call_operand.vmem [shape: f32[2,4,64], index: 3, kind: output, shape index: {}]
  %s4 = sld [smem:[#allocation0]]
  $region45: #{up_forward.3} parent=0
    _
  %s6 = ssub.s32 1, %s4
  %s7 = scalar_select 0, %s6, %s4
  loop: start=0, step=1, limit=4
  $region2: #{up_forward.3} parent=0 // loop_pre_header
    _
  $region3: #{up_forward.3} parent=0 // loop_header
    %s9 = sphi 0, %s13
    %p10 = scmp.ge.s32.totalorder %s9, 4
    %s16 = sphi 0, %s28
    %s17 = sphi 0, %s24
    %s18 = sphi 0, %s16
    %s19 = sphi 0, %s17
    %s20 = sphi 0, %s18
    %s21 = sphi 0, %s19
    %s33 = sphi 0, %s35
    %s36 = sphi 0, %s33
    %s37 = sphi 0, %s36
    %s53 = sphi 0, %s37
    %s57 = sphi 0, %s57
    %s59 = sphi 0, %s57
    %s60 = sphi 0, %s59
    %s74 = sphi 0, %s60
    %s78 = sphi 0, %s78
    %s80 = sphi 0, %s78
    %s81 = sphi 0, %s80
    %s95 = sphi 0, %s81
    %s103 = sphi 0, %s105
    %s106 = sphi 0, %s103
    %s107 = sphi 0, %s106
    %s123 = sphi 0, %s107
  $region4: #{up_forward.3} parent=0 // loop_header_branch
    %12 = sbr.rel (%p10) target = $region8
  $region5: #{up_forward.3} parent=0 // loop_body
    %s14 = ssub.s32 %s9, 1
    %s15 = ssub.s32 %s9, 2
    %s22 = sadd.s32 1, %s17
    %p23 = scmp.ge.s32.totalorder %s22, 1
    %s24 = scalar_select %p23, 0, %s22
    %s25 = sadd.s32 1, %s16
    %s26 = scalar_select %p23, %s25, %s16
    %p27 = scmp.ge.s32.totalorder %s26, 2
    %s28 = scalar_select %p27, 0, %s26
    %s29 = ssub.s32 %s16, %s28
    %s30 = ssub.s32 %s17, %s24
    %s31 = sor.u32 %s29, %s30
    %p32 = scmp.eq.s32.totalorder %s31, 0
    %s34 = sadd.s32 %s33, 1
    %s35 = scalar_select %p32, %s33, %s34
    %p38 = pneg %p32
    %p39 = scmp.eq.s32.totalorder %s9, 1
    %p40 = por %p38, %p39
    %p41 = scmp.ne.s32.totalorder %s33, %s36
    %p42 = scmp.eq.s32.totalorder %s9, 0
    %p43 = por %p41, %p42
    %p44 = scmp.ne.s32.totalorder %s33, %s36
    %p45 = scmp.eq.s32.totalorder %s14, 1
    %p46 = por %p44, %p45
    %p47 = scmp.ne.s32.totalorder %s36, %s37
    %p48 = scmp.eq.s32.totalorder %s14, 0
    %p49 = por %p47, %p48
    %p50 = scmp.ne.s32.totalorder %s36, %s37
    %p51 = scmp.eq.s32.totalorder %s15, 1
    %p52 = por %p50, %p51
    %p54 = scmp.ne.s32.totalorder %s37, %s53
    %p55 = scmp.eq.s32.totalorder %s15, 0
    %p56 = por %p54, %p55
    %s58 = sadd.s32 %s57, 1
    %p61 = scmp.eq.s32.totalorder %s9, 1
    %p62 = scmp.ne.s32.totalorder %s57, %s59
    %p63 = scmp.eq.s32.totalorder %s9, 0
    %p64 = por %p62, %p63
    %p65 = scmp.ne.s32.totalorder %s57, %s59
    %p66 = scmp.eq.s32.totalorder %s14, 1
    %p67 = por %p65, %p66
    %p68 = scmp.ne.s32.totalorder %s59, %s60
    %p69 = scmp.eq.s32.totalorder %s14, 0
    %p70 = por %p68, %p69
    %p71 = scmp.ne.s32.totalorder %s59, %s60
    %p72 = scmp.eq.s32.totalorder %s15, 1
    %p73 = por %p71, %p72
    %p75 = scmp.ne.s32.totalorder %s60, %s74
    %p76 = scmp.eq.s32.totalorder %s15, 0
    %p77 = por %p75, %p76
    %s79 = sadd.s32 %s78, 1
    %p82 = scmp.eq.s32.totalorder %s9, 1
    %p83 = scmp.ne.s32.totalorder %s78, %s80
    %p84 = scmp.eq.s32.totalorder %s9, 0
    %p85 = por %p83, %p84
    %p86 = scmp.ne.s32.totalorder %s78, %s80
    %p87 = scmp.eq.s32.totalorder %s14, 1
    %p88 = por %p86, %p87
    %p89 = scmp.ne.s32.totalorder %s80, %s81
    %p90 = scmp.eq.s32.totalorder %s14, 0
    %p91 = por %p89, %p90
    %p92 = scmp.ne.s32.totalorder %s80, %s81
    %p93 = scmp.eq.s32.totalorder %s15, 1
    %p94 = por %p92, %p93
    %p96 = scmp.ne.s32.totalorder %s81, %s95
    %p97 = scmp.eq.s32.totalorder %s15, 0
    %p98 = por %p96, %p97
    %s99 = ssub.s32 %s16, %s28
    %s100 = ssub.s32 %s17, %s24
    %s101 = sor.u32 %s99, %s100
    %p102 = scmp.eq.s32.totalorder %s101, 0
    %s104 = sadd.s32 %s103, 1
    %s105 = scalar_select %p102, %s103, %s104
    %p108 = pneg %p102
    %p109 = scmp.eq.s32.totalorder %s9, 1
    %p110 = por %p108, %p109
    %p111 = scmp.ne.s32.totalorder %s103, %s106
    %p112 = scmp.eq.s32.totalorder %s9, 0
    %p113 = por %p111, %p112
    %p114 = scmp.ne.s32.totalorder %s103, %s106
    %p115 = scmp.eq.s32.totalorder %s14, 1
    %p116 = por %p114, %p115
    %p117 = scmp.ne.s32.totalorder %s106, %s107
    %p118 = scmp.eq.s32.totalorder %s14, 0
    %p119 = por %p117, %p118
    %p120 = scmp.ne.s32.totalorder %s106, %s107
    %p121 = scmp.eq.s32.totalorder %s15, 1
    %p122 = por %p120, %p121
    %p124 = scmp.ne.s32.totalorder %s107, %s123
    %p125 = scmp.eq.s32.totalorder %s15, 0
    %p126 = por %p124, %p125
    %p127 = scmp.le.s32.totalorder 1, %s9
    %p128 = scmp.lt.s32.totalorder %s9, 3
    %p129 = pnand %p127, %p128
    %p130 = pneg %p129
    // Predicated region
    $region9: #{up_forward.3} parent=5 // pred_check
      _
    $region10: #{up_forward.3} parent=5 // pred_check_branch
      %132 = sbr.rel (%p129) target = $region12
    $region11: #{up_forward.3} parent=5 // pred_region
      %s133 = ssub.s32 %s9, 1
      // Predicated region
      $region13: #{up_forward.3} parent=11 // pred_check
        %p134 = pneg %p70
      $region14: #{up_forward.3} parent=11 // pred_check_branch
        %136 = sbr.rel (%p134) target = $region16
      $region15: #{up_forward.3} parent=11 // pred_region
        _
      $region16: #{up_forward.3} parent=11 // pred_fallthru
        _
      // Predicated region
      $region17: #{up_forward.3} parent=11 // pred_check
        %p137 = pneg %p91
      $region18: #{up_forward.3} parent=11 // pred_check_branch
        %139 = sbr.rel (%p137) target = $region20
      $region19: #{up_forward.3} parent=11 // pred_region
        _
      $region20: #{up_forward.3} parent=11 // pred_fallthru
        _
    $region12: #{up_forward.3} parent=5 // pred_fallthru
      _
    %p140 = scmp.lt.s32.totalorder %s9, 2
    // Predicated region
    $region21: #{up_forward.3} parent=5 // pred_check
      %p141 = pneg %p140
    $region22: #{up_forward.3} parent=5 // pred_check_branch
      %143 = sbr.rel (%p141) target = $region24
    $region23: #{up_forward.3} parent=5 // pred_region
      // Predicated region
      $region25: #{up_forward.3} parent=23 // pred_check
        %p144 = pneg %p43
      $region26: #{up_forward.3} parent=23 // pred_check_branch
        %146 = sbr.rel (%p144) target = $region28
      $region27: #{up_forward.3} parent=23 // pred_region
        %p147 = scmp.lt.s32.totalorder %s16, 1
        %s148 = scalar_select %p147, %s16, 1
        %p149 = scmp.lt.s32.totalorder %s17, 0
        %s150 = scalar_select %p149, %s17, 0
        %s151 = sadd.s32 %s150, %s148
        %s152 = smul.addr %s151, 8
        %s153 = scalar_lea.vmem %s0, %s152
      $region28: #{up_forward.3} parent=23 // pred_fallthru
        _
    $region24: #{up_forward.3} parent=5 // pred_fallthru
      _
    %p154 = scmp.le.s32.totalorder 1, %s9
    %p155 = scmp.lt.s32.totalorder %s9, 3
    %p156 = pnand %p154, %p155
    %p157 = pneg %p156
    // Predicated region
    $region29: #{up_forward.3} parent=5 // pred_check
      _
    $region30: #{up_forward.3} parent=5 // pred_check_branch
      %159 = sbr.rel (%p156) target = $region32
    $region31: #{up_forward.3} parent=5 // pred_region
      %s160 = ssub.s32 %s9, 1
      %p161 = scmp.lt.s32.totalorder %s18, 1
      %s162 = scalar_select %p161, %s18, 1
      %p163 = scmp.lt.s32.totalorder %s19, 0
      %s164 = scalar_select %p163, %s19, 0
      %s165 = sadd.s32 %s164, %s162
      %s166 = smul.addr %s165, 8
      %s167 = scalar_lea.vmem %s0, %s166
      %p168 = pneg %p49
      %p169 = pneg %p46
      %p170 = pneg %p70
      %p171 = pneg %p67
      %p172 = pneg %p91
      %p173 = pneg %p88
      %p174 = pneg %p119
      %p175 = pneg %p116
      %p176 = scmp.lt.s32.totalorder %s18, 1
      %s177 = scalar_select %p176, %s18, 1
      %p178 = scmp.lt.s32.totalorder %s19, 0
      %s179 = scalar_select %p178, %s19, 0
      %s180 = sadd.s32 %s179, %s177
      %s181 = smul.addr %s180, 4
      %s182 = scalar_lea.vmem %s3, %s181
      %p183 = scmp.lt.s32.totalorder %s18, 1
      %s184 = scalar_select %p183, %s18, 1
      %p185 = scmp.lt.s32.totalorder %s19, 0
      %s186 = scalar_select %p185, %s19, 0
      %s187 = sadd.s32 %s186, %s184
      %s188 = smul.addr %s187, 8
      %s189 = scalar_lea.vmem %s0, %s188
      %p190 = scmp.lt.s32.totalorder %s18, 1
      %s191 = scalar_select %p190, %s18, 1
      %p192 = scmp.lt.s32.totalorder %s19, 0
      %s193 = scalar_select %p192, %s19, 0
      %s194 = sadd.s32 %s193, %s191
      %s195 = smul.addr %s194, 4
      %s196 = scalar_lea.vmem %s3, %s195
      %v197 = vld [vmem:[%s189] sm:$0xff]
      %v198 = vld [vmem:[%s1] sm:$0xf]
      %v199 = vld [vmem:[%s2] sm:$0xf]
      %201 = vset.pattern.permute.xlu0 0
      %202 = vperm.xlu0 %201, %v199
      %v203 = vpop.permute.xlu0 %202
      %vm205 = vcmask 64512
      %v207 = vsel %vm205, %v198, 0
      %209 = vmatprep.subr.mxu0 0.0
      %210 = vmatpush1.msra.mxu0 0.0
      %211 = vmatprep.subr.mxu0 0.0
      %212 = vmatpush1.msra.mxu0 0.0
      %213 = vmatprep.subr.mxu0 0.0
      %214 = vmatpush1.msra.mxu0 0.0
      %215 = vmatprep.subr.mxu0 0.0
      %216 = vmatpush1.msra.mxu0 0.0
      %217 = vmatprep.subr.mxu0 0.0
      %218 = vmatpush1.msra.mxu0 0.0
      %219 = vmatprep.subr.mxu0 0.0
      %220 = vmatpush1.msra.mxu0 0.0
      %221 = vmatprep.subr.mxu0 0.0
      %222 = vmatpush1.msra.mxu0 0.0
      %223 = vmatprep.subr.mxu0 0.0
      %224 = vmatpush1.msra.mxu0 0.0
      %225 = vmatprep.subr.mxu0 0.0
      %226 = vmatpush1.msra.mxu0 0.0
      %227 = vmatprep.subr.mxu0 0.0
      %228 = vmatpush1.msra.mxu0 0.0
      %229 = vmatprep.subr.mxu0 0.0
      %230 = vmatpush1.msra.mxu0 0.0
      %231 = vmatprep.subr.mxu0 0.0
      %232 = vmatpush1.msra.mxu0 0.0
      %233 = vmatprep.subr.mxu0 0.0
      %234 = vmatpush1.msra.mxu0 0.0
      %235 = vmatprep.subr.mxu0 0.0
      %236 = vmatpush1.msra.mxu0 0.0
      %237 = vmatprep.subr.mxu0 0.0
      %238 = vmatpush1.msra.mxu0 0.0
      %239 = vmatprep.subr.mxu0 0.0
      %240 = vmatpush1.msra.mxu0 %v197
      %241 = vmatprep.subr.mxu0 0.0
      %242 = vmatpush2.msra.mxu0 0.0
      %243 = vmatprep.subr.mxu0 0.0
      %244 = vmatpush2.msra.mxu0 0.0
      %245 = vmatprep.subr.mxu0 0.0
      %246 = vmatpush2.msra.mxu0 0.0
      %247 = vmatprep.subr.mxu0 0.0
      %248 = vmatpush2.msra.mxu0 0.0
      %249 = vmatprep.subr.mxu0 0.0
      %250 = vmatpush2.msra.mxu0 0.0
      %251 = vmatprep.subr.mxu0 0.0
      %252 = vmatpush2.msra.mxu0 0.0
      %253 = vmatprep.subr.mxu0 0.0
      %254 = vmatpush2.msra.mxu0 0.0
      %255 = vmatprep.subr.mxu0 0.0
      %256 = vmatpush2.msra.mxu0 0.0
      %257 = vmatprep.subr.mxu0 0.0
      %258 = vmatpush2.msra.mxu0 0.0
      %259 = vmatprep.subr.mxu0 0.0
      %260 = vmatpush2.msra.mxu0 0.0
      %261 = vmatprep.subr.mxu0 0.0
      %262 = vmatpush2.msra.mxu0 0.0
      %263 = vmatprep.subr.mxu0 0.0
      %264 = vmatpush2.msra.mxu0 0.0
      %265 = vmatprep.subr.mxu0 0.0
      %266 = vmatpush2.msra.mxu0 0.0
      %267 = vmatprep.subr.mxu0 0.0
      %268 = vmatpush2.msra.mxu0 0.0
      %269 = vmatprep.subr.mxu0 0.0
      %270 = vmatpush2.msra.mxu0 0.0
      %271 = vmatprep.subr.mxu0 0.0
      %272 = vmatpush2.msra.mxu0 0.0
      %273 = vmatprep.mubr.f32.mxu0 0.0
      %274 = vmatmul.mubr.f32.gmra.mxu0 %v207
      %v275 = vpop.f32.mrf.mxu0
      %v276 = vadd.f32 %v203, %v275
      %v277 = vpop.f32.mrf.mxu0
      %278 = vdwg.mxu0
      %vm279 = vcmask 519168
      %280 = vst.msk [vmem:[%s196] sm:$0xf] %vm279, %v276
      %p281 = scmp.lt.s32.totalorder %s18, 1
      %s282 = scalar_select %p281, %s18, 1
      %p283 = scmp.lt.s32.totalorder %s19, 0
      %s284 = scalar_select %p283, %s19, 0
      %s285 = sadd.s32 %s284, %s282
      %s286 = smul.addr %s285, 4
      %s287 = scalar_lea.vmem %s3, %s286
      // Predicated region
      $region33: #{up_forward.3} parent=31 // pred_check
        %p288 = pneg %p116
      $region34: #{up_forward.3} parent=31 // pred_check_branch
        %290 = sbr.rel (%p288) target = $region36
      $region35: #{up_forward.3} parent=31 // pred_region
        _
      $region36: #{up_forward.3} parent=31 // pred_fallthru
        _
    $region32: #{up_forward.3} parent=5 // pred_fallthru
      _
    %p291 = scmp.le.s32.totalorder 2, %s9
    // Predicated region
    $region37: #{up_forward.3} parent=5 // pred_check
      %p292 = pneg %p291
    $region38: #{up_forward.3} parent=5 // pred_check_branch
      %294 = sbr.rel (%p292) target = $region40
    $region39: #{up_forward.3} parent=5 // pred_region
      %s295 = ssub.s32 %s9, 2
      // Predicated region
      $region41: #{up_forward.3} parent=39 // pred_check
        %p296 = pneg %p122
      $region42: #{up_forward.3} parent=39 // pred_check_branch
        %298 = sbr.rel (%p296) target = $region44
      $region43: #{up_forward.3} parent=39 // pred_region
        %p299 = scmp.lt.s32.totalorder %s20, 1
        %s300 = scalar_select %p299, %s20, 1
        %p301 = scmp.lt.s32.totalorder %s21, 0
        %s302 = scalar_select %p301, %s21, 0
        %s303 = sadd.s32 %s302, %s300
        %s304 = smul.addr %s303, 4
        %s305 = scalar_lea.vmem %s3, %s304
      $region44: #{up_forward.3} parent=39 // pred_fallthru
        _
    $region40: #{up_forward.3} parent=5 // pred_fallthru
      _
  $region6: #{up_forward.3} parent=0 // loop_footer
    %s13 = sadd.s32 1, %s9
  $region7: #{up_forward.3} parent=0 // loop_footer_branch
    %8 = sbr.rel target = $region3
  $region8: #{up_forward.3} parent=0 // loop_exit
    _

// kernel: up_forward.4
$region0: #{up_forward.4}
  #allocation0 [shape = 'u32[]', space=smem, size = 0x4, offset = 0x4, fixed_abs, tag = 'smem constant byte address 0x4 - core index']
  #allocation1 [shape = 'u32[144,128]{1,0:T(1,128)}', space=vmem, size = 0x12000, scoped, tag = 'internal scratch']
  %s0 = inlined_call_operand.vmem [shape: f32[2,4,512], index: 0, kind: input, shape index: {}]
  %s1 = inlined_call_operand.vmem [shape: f32[2,1,4,1], index: 1, kind: output, shape index: {0}]
  %s2 = inlined_call_operand.vmem [shape: f32[2,1,4,1], index: 2, kind: output, shape index: {1}]
  %3 = xla_tuple %s1, %s2
  %s4 = sld [smem:[#allocation0]]
  $region49: #{up_forward.4} parent=0
    _
  %s6 = ssub.s32 1, %s4
  %s7 = scalar_select 0, %s6, %s4
  loop: start=0, step=1, limit=4
  $region2: #{up_forward.4} parent=0 // loop_pre_header
    _
  $region3: #{up_forward.4} parent=0 // loop_header
    %s9 = sphi 0, %s13
    %p10 = scmp.ge.s32.totalorder %s9, 4
    %s16 = sphi 0, %s35
    %s17 = sphi 0, %s31
    %s18 = sphi 0, %s27
    %s19 = sphi 0, %s16
    %s20 = sphi 0, %s17
    %s21 = sphi 0, %s18
    %s22 = sphi 0, %s19
    %s23 = sphi 0, %s20
    %s24 = sphi 0, %s21
    %s42 = sphi 0, %s44
    %s45 = sphi 0, %s42
    %s46 = sphi 0, %s45
    %s62 = sphi 0, %s46
    %s70 = sphi 0, %s72
    %s73 = sphi 0, %s70
    %s74 = sphi 0, %s73
    %s90 = sphi 0, %s74
    %s98 = sphi 0, %s100
    %s101 = sphi 0, %s98
    %s102 = sphi 0, %s101
    %s118 = sphi 0, %s102
  $region4: #{up_forward.4} parent=0 // loop_header_branch
    %12 = sbr.rel (%p10) target = $region8
  $region5: #{up_forward.4} parent=0 // loop_body
    %s14 = ssub.s32 %s9, 1
    %s15 = ssub.s32 %s9, 2
    %s25 = sadd.s32 1, %s18
    %p26 = scmp.ge.s32.totalorder %s25, 1
    %s27 = scalar_select %p26, 0, %s25
    %s28 = sadd.s32 1, %s17
    %s29 = scalar_select %p26, %s28, %s17
    %p30 = scmp.ge.s32.totalorder %s29, 1
    %s31 = scalar_select %p30, 0, %s29
    %s32 = sadd.s32 1, %s16
    %s33 = scalar_select %p30, %s32, %s16
    %p34 = scmp.ge.s32.totalorder %s33, 2
    %s35 = scalar_select %p34, 0, %s33
    %s36 = sadd.s32 %s17, %s18
    %s37 = sadd.s32 %s31, %s27
    %s38 = ssub.s32 %s16, %s35
    %s39 = ssub.s32 %s36, %s37
    %s40 = sor.u32 %s38, %s39
    %p41 = scmp.eq.s32.totalorder %s40, 0
    %s43 = sadd.s32 %s42, 1
    %s44 = scalar_select %p41, %s42, %s43
    %p47 = pneg %p41
    %p48 = scmp.eq.s32.totalorder %s9, 1
    %p49 = por %p47, %p48
    %p50 = scmp.ne.s32.totalorder %s42, %s45
    %p51 = scmp.eq.s32.totalorder %s9, 0
    %p52 = por %p50, %p51
    %p53 = scmp.ne.s32.totalorder %s42, %s45
    %p54 = scmp.eq.s32.totalorder %s14, 1
    %p55 = por %p53, %p54
    %p56 = scmp.ne.s32.totalorder %s45, %s46
    %p57 = scmp.eq.s32.totalorder %s14, 0
    %p58 = por %p56, %p57
    %p59 = scmp.ne.s32.totalorder %s45, %s46
    %p60 = scmp.eq.s32.totalorder %s15, 1
    %p61 = por %p59, %p60
    %p63 = scmp.ne.s32.totalorder %s46, %s62
    %p64 = scmp.eq.s32.totalorder %s15, 0
    %p65 = por %p63, %p64
    %s66 = ssub.s32 %s16, %s35
    %s67 = ssub.s32 %s17, %s31
    %s68 = sor.u32 %s66, %s67
    %p69 = scmp.eq.s32.totalorder %s68, 0
    %s71 = sadd.s32 %s70, 1
    %s72 = scalar_select %p69, %s70, %s71
    %p75 = pneg %p69
    %p76 = scmp.eq.s32.totalorder %s9, 1
    %p77 = por %p75, %p76
    %p78 = scmp.ne.s32.totalorder %s70, %s73
    %p79 = scmp.eq.s32.totalorder %s9, 0
    %p80 = por %p78, %p79
    %p81 = scmp.ne.s32.totalorder %s70, %s73
    %p82 = scmp.eq.s32.totalorder %s14, 1
    %p83 = por %p81, %p82
    %p84 = scmp.ne.s32.totalorder %s73, %s74
    %p85 = scmp.eq.s32.totalorder %s14, 0
    %p86 = por %p84, %p85
    %p87 = scmp.ne.s32.totalorder %s73, %s74
    %p88 = scmp.eq.s32.totalorder %s15, 1
    %p89 = por %p87, %p88
    %p91 = scmp.ne.s32.totalorder %s74, %s90
    %p92 = scmp.eq.s32.totalorder %s15, 0
    %p93 = por %p91, %p92
    %s94 = ssub.s32 %s16, %s35
    %s95 = ssub.s32 %s17, %s31
    %s96 = sor.u32 %s94, %s95
    %p97 = scmp.eq.s32.totalorder %s96, 0
    %s99 = sadd.s32 %s98, 1
    %s100 = scalar_select %p97, %s98, %s99
    %p103 = pneg %p97
    %p104 = scmp.eq.s32.totalorder %s9, 1
    %p105 = por %p103, %p104
    %p106 = scmp.ne.s32.totalorder %s98, %s101
    %p107 = scmp.eq.s32.totalorder %s9, 0
    %p108 = por %p106, %p107
    %p109 = scmp.ne.s32.totalorder %s98, %s101
    %p110 = scmp.eq.s32.totalorder %s14, 1
    %p111 = por %p109, %p110
    %p112 = scmp.ne.s32.totalorder %s101, %s102
    %p113 = scmp.eq.s32.totalorder %s14, 0
    %p114 = por %p112, %p113
    %p115 = scmp.ne.s32.totalorder %s101, %s102
    %p116 = scmp.eq.s32.totalorder %s15, 1
    %p117 = por %p115, %p116
    %p119 = scmp.ne.s32.totalorder %s102, %s118
    %p120 = scmp.eq.s32.totalorder %s15, 0
    %p121 = por %p119, %p120
    %p122 = scmp.le.s32.totalorder 1, %s9
    %p123 = scmp.lt.s32.totalorder %s9, 3
    %p124 = pnand %p122, %p123
    %p125 = pneg %p124
    // Predicated region
    $region9: #{up_forward.4} parent=5 // pred_check
      _
    $region10: #{up_forward.4} parent=5 // pred_check_branch
      %127 = sbr.rel (%p124) target = $region12
    $region11: #{up_forward.4} parent=5 // pred_region
      %s128 = ssub.s32 %s9, 1
    $region12: #{up_forward.4} parent=5 // pred_fallthru
      _
    %p129 = scmp.lt.s32.totalorder %s9, 2
    // Predicated region
    $region13: #{up_forward.4} parent=5 // pred_check
      %p130 = pneg %p129
    $region14: #{up_forward.4} parent=5 // pred_check_branch
      %132 = sbr.rel (%p130) target = $region16
    $region15: #{up_forward.4} parent=5 // pred_region
      // Predicated region
      $region17: #{up_forward.4} parent=15 // pred_check
        %p133 = pneg %p52
      $region18: #{up_forward.4} parent=15 // pred_check_branch
        %135 = sbr.rel (%p133) target = $region20
      $region19: #{up_forward.4} parent=15 // pred_region
        %s136 = sadd.s32 %s17, %s18
        %s137 = smul.u32 4, %s136
        %p138 = scmp.lt.s32.totalorder %s16, 1
        %s139 = scalar_select %p138, %s16, 1
        %p140 = scmp.lt.s32.totalorder %s137, 3
        %s141 = scalar_select %p140, %s137, 3
        %s142 = smul.addr %s139, 4
        %s143 = sadd.s32 %s141, %s142
        %s144 = smul.addr %s143, 4
        %s145 = scalar_lea.vmem %s0, %s144
        %s146 = sadd.s32 %s17, %s18
        %s147 = smul.u32 4, %s146
      $region20: #{up_forward.4} parent=15 // pred_fallthru
        _
    $region16: #{up_forward.4} parent=5 // pred_fallthru
      _
    %p148 = scmp.le.s32.totalorder 1, %s9
    %p149 = scmp.lt.s32.totalorder %s9, 3
    %p150 = pnand %p148, %p149
    %p151 = pneg %p150
    // Predicated region
    $region21: #{up_forward.4} parent=5 // pred_check
      _
    $region22: #{up_forward.4} parent=5 // pred_check_branch
      %153 = sbr.rel (%p150) target = $region24
    $region23: #{up_forward.4} parent=5 // pred_region
      %s154 = ssub.s32 %s9, 1
      %s155 = sadd.s32 %s20, %s21
      %s156 = smul.u32 4, %s155
      %p157 = scmp.lt.s32.totalorder %s19, 1
      %s158 = scalar_select %p157, %s19, 1
      %p159 = scmp.lt.s32.totalorder %s156, 3
      %s160 = scalar_select %p159, %s156, 3
      %s161 = smul.addr %s158, 4
      %s162 = sadd.s32 %s160, %s161
      %s163 = smul.addr %s162, 4
      %s164 = scalar_lea.vmem %s0, %s163
      %p165 = pneg %p58
      %p166 = pneg %p55
      %p167 = pneg %p86
      %p168 = pneg %p83
      %p169 = scmp.lt.s32.totalorder %s19, 1
      %s170 = scalar_select %p169, %s19, 1
      %p171 = scmp.lt.s32.totalorder %s20, 0
      %s172 = scalar_select %p171, %s20, 0
      %s173 = sadd.s32 %s172, %s170
      %s174 = smul.addr %s173, 4
      %s175 = scalar_lea.vmem %s1, %s174
      %p176 = pneg %p114
      %p177 = pneg %p111
      %p178 = scmp.lt.s32.totalorder %s19, 1
      %s179 = scalar_select %p178, %s19, 1
      %p180 = scmp.lt.s32.totalorder %s20, 0
      %s181 = scalar_select %p180, %s20, 0
      %s182 = sadd.s32 %s181, %s179
      %s183 = smul.addr %s182, 4
      %s184 = scalar_lea.vmem %s2, %s183
      %s185 = sadd.s32 %s20, %s21
      %s186 = smul.u32 4, %s185
      %p187 = scmp.lt.s32.totalorder %s19, 1
      %s188 = scalar_select %p187, %s19, 1
      %p189 = scmp.lt.s32.totalorder %s186, 3
      %s190 = scalar_select %p189, %s186, 3
      %s191 = smul.addr %s188, 4
      %s192 = sadd.s32 %s190, %s191
      %s193 = smul.addr %s192, 4
      %s194 = scalar_lea.vmem %s0, %s193
      %s195 = sadd.s32 %s20, %s21
      %s196 = smul.u32 4, %s195
      %p197 = scmp.lt.s32.totalorder %s19, 1
      %s198 = scalar_select %p197, %s19, 1
      %p199 = scmp.lt.s32.totalorder %s20, 0
      %s200 = scalar_select %p199, %s20, 0
      %s201 = sadd.s32 %s200, %s198
      %s202 = smul.addr %s201, 4
      %s203 = scalar_lea.vmem %s1, %s202
      %p204 = scmp.lt.s32.totalorder %s19, 1
      %s205 = scalar_select %p204, %s19, 1
      %p206 = scmp.lt.s32.totalorder %s20, 0
      %s207 = scalar_select %p206, %s20, 0
      %s208 = sadd.s32 %s207, %s205
      %s209 = smul.addr %s208, 4
      %s210 = scalar_lea.vmem %s2, %s209
      %p211 = scmp.eq.s32.totalorder %s21, 0
      // Predicated region
      $region25: #{up_forward.4} parent=23 // pred_check
        %p212 = pneg %p211
      $region26: #{up_forward.4} parent=23 // pred_check_branch
        %214 = sbr.rel (%p212) target = $region28
      $region27: #{up_forward.4} parent=23 // pred_region
        %vm215 = vcmask 3072
        %216 = vst.msk [vmem:[%s203] sm:$0xf] %vm215, 0.0
        %217 = vst.msk [vmem:[%s210] sm:$0xf] %vm215, -inf
      $region28: #{up_forward.4} parent=23 // pred_fallthru
        _
      %v218 = vld [vmem:[%s194] sm:$0xff]
      %v219 = vld [vmem:[%s194 + $0x8] sm:$0xff]
      %v220 = vld [vmem:[%s203] sm:$0xf]
      %v223 = vcombine.high %v218, %v218
      %v224 = vcombine.high %v219, %v219
      %vm227 = vcmask 1043456
      %v228 = vsel %vm227, %v218, 0.0
      %v229 = vsel %vm227, %v223, 0.0
      %v230 = vadd.f32 %v228, %v229
      %v231 = vsel %vm227, %v219, 0.0
      %v232 = vadd.f32 %v230, %v231
      %v233 = vsel %vm227, %v224, 0.0
      %v234 = vadd.f32 %v232, %v233
      %235 = vadd.xlane.f32.xlu0 %v234
      %v236 = vpop.xlane.xlu0 %235
      %v237 = vadd.f32 %v220, %v236
      %vm238 = vcmask 3072
      %239 = vst.msk [vmem:[%s203] sm:$0xf] %vm238, %v237
      %v240 = vld [vmem:[%s210] sm:$0xf]
      %v241 = vsel %vm227, %v218, -inf
      %v242 = vsel %vm227, %v223, -inf
      %v243 = vsel %vm227, %v219, -inf
      %v244 = vsel %vm227, %v224, -inf
      %v245 = vmax.f32 %v241, %v242
      %v246 = vmax.f32 %v243, %v244
      %v247 = vmax.f32 %v245, %v246
      %248 = vmax.xlane.f32.xlu0 %v247
      %v249 = vpop.xlane.xlu0 %248
      %v250 = vmax.f32 %v240, %v249
      %251 = vst.msk [vmem:[%s210] sm:$0xf] %vm238, %v250
      %p252 = scmp.lt.s32.totalorder %s19, 1
      %s253 = scalar_select %p252, %s19, 1
      %p254 = scmp.lt.s32.totalorder %s20, 0
      %s255 = scalar_select %p254, %s20, 0
      %s256 = sadd.s32 %s255, %s253
      %s257 = smul.addr %s256, 4
      %s258 = scalar_lea.vmem %s1, %s257
      %p259 = scmp.lt.s32.totalorder %s19, 1
      %s260 = scalar_select %p259, %s19, 1
      %p261 = scmp.lt.s32.totalorder %s20, 0
      %s262 = scalar_select %p261, %s20, 0
      %s263 = sadd.s32 %s262, %s260
      %s264 = smul.addr %s263, 4
      %s265 = scalar_lea.vmem %s2, %s264
      // Predicated region
      $region29: #{up_forward.4} parent=23 // pred_check
        %p266 = pneg %p83
      $region30: #{up_forward.4} parent=23 // pred_check_branch
        %268 = sbr.rel (%p266) target = $region32
      $region31: #{up_forward.4} parent=23 // pred_region
        _
      $region32: #{up_forward.4} parent=23 // pred_fallthru
        _
      // Predicated region
      $region33: #{up_forward.4} parent=23 // pred_check
        %p269 = pneg %p111
      $region34: #{up_forward.4} parent=23 // pred_check_branch
        %271 = sbr.rel (%p269) target = $region36
      $region35: #{up_forward.4} parent=23 // pred_region
        _
      $region36: #{up_forward.4} parent=23 // pred_fallthru
        _
    $region24: #{up_forward.4} parent=5 // pred_fallthru
      _
    %p272 = scmp.le.s32.totalorder 2, %s9
    // Predicated region
    $region37: #{up_forward.4} parent=5 // pred_check
      %p273 = pneg %p272
    $region38: #{up_forward.4} parent=5 // pred_check_branch
      %275 = sbr.rel (%p273) target = $region40
    $region39: #{up_forward.4} parent=5 // pred_region
      %s276 = ssub.s32 %s9, 2
      // Predicated region
      $region41: #{up_forward.4} parent=39 // pred_check
        %p277 = pneg %p89
      $region42: #{up_forward.4} parent=39 // pred_check_branch
        %279 = sbr.rel (%p277) target = $region44
      $region43: #{up_forward.4} parent=39 // pred_region
        %p280 = scmp.lt.s32.totalorder %s22, 1
        %s281 = scalar_select %p280, %s22, 1
        %p282 = scmp.lt.s32.totalorder %s23, 0
        %s283 = scalar_select %p282, %s23, 0
        %s284 = sadd.s32 %s283, %s281
        %s285 = smul.addr %s284, 4
        %s286 = scalar_lea.vmem %s1, %s285
      $region44: #{up_forward.4} parent=39 // pred_fallthru
        _
      // Predicated region
      $region45: #{up_forward.4} parent=39 // pred_check
        %p287 = pneg %p117
      $region46: #{up_forward.4} parent=39 // pred_check_branch
        %289 = sbr.rel (%p287) target = $region48
      $region47: #{up_forward.4} parent=39 // pred_region
        %p290 = scmp.lt.s32.totalorder %s22, 1
        %s291 = scalar_select %p290, %s22, 1
        %p292 = scmp.lt.s32.totalorder %s23, 0
        %s293 = scalar_select %p292, %s23, 0
        %s294 = sadd.s32 %s293, %s291
        %s295 = smul.addr %s294, 4
        %s296 = scalar_lea.vmem %s2, %s295
      $region48: #{up_forward.4} parent=39 // pred_fallthru
        _
    $region40: #{up_forward.4} parent=5 // pred_fallthru
      _
  $region6: #{up_forward.4} parent=0 // loop_footer
    %s13 = sadd.s32 1, %s9
  $region7: #{up_forward.4} parent=0 // loop_footer_branch
    %8 = sbr.rel target = $region3
  $region8: #{up_forward.4} parent=0 // loop_exit
    _

// kernel: up_forward.5
$region0: #{up_forward.5}
  #allocation0 [shape = 'u32[]', space=smem, size = 0x4, offset = 0x4, fixed_abs, tag = 'smem constant byte address 0x4 - core index']
  #allocation1 [shape = 'u32[144,128]{1,0:T(1,128)}', space=vmem, size = 0x12000, scoped, tag = 'internal scratch']
  #allocation2 [shape = 'f32[1,1]{1,0:T(1,128)S(1)}', space=vmem, size = 0x200, scoped, tag = 'scoped memory for up_forward.5']
  %s0 = inlined_call_operand.vmem [shape: f32[2,4,512], index: 0, kind: input, shape index: {}]
  %s1 = inlined_call_operand.vmem [shape: f32[2,4,512], index: 1, kind: input, shape index: {}]
  %s2 = inlined_call_operand.vmem [shape: f32[2,4,1], index: 2, kind: input, shape index: {}]
  %s3 = inlined_call_operand.vmem [shape: f32[1,2], index: 3, kind: input, shape index: {}]
  %s4 = inlined_call_operand.<no memory space> [shape: f32[1,1], index: 4, kind: input, shape index: {}]
  %s5 = inlined_call_operand.vmem [shape: f32[4,1], index: 5, kind: input, shape index: {}]
  %s6 = inlined_call_operand.vmem [shape: f32[4,1], index: 6, kind: input, shape index: {}]
  %s7 = inlined_call_operand.vmem [shape: f32[4,1], index: 7, kind: input, shape index: {}]
  %s8 = inlined_call_operand.vmem [shape: f32[4,1], index: 8, kind: input, shape index: {}]
  %s9 = inlined_call_operand.vmem [shape: f32[4,4], index: 9, kind: input, shape index: {}]
  %s10 = inlined_call_operand.vmem [shape: f32[4,4], index: 10, kind: input, shape index: {}]
  %s11 = inlined_call_operand.vmem [shape: f32[4,1], index: 11, kind: input, shape index: {}]
  %s12 = inlined_call_operand.vmem [shape: f32[2,4,512], index: 12, kind: output, shape index: {}]
  %s13 = sld [smem:[#allocation0]]
  $region81: #{up_forward.5} parent=0
    _
  %s15 = ssub.s32 1, %s13
  %s16 = scalar_select 0, %s15, %s13
  %v17 = vstv %s4
  %18 = vst [vmem:[#allocation2] sm:$0x1] %v17
  loop: start=0, step=1, limit=4
  $region2: #{up_forward.5} parent=0 // loop_pre_header
    _
  $region3: #{up_forward.5} parent=0 // loop_header
    %s20 = sphi 0, %s24
    %p21 = scmp.ge.s32.totalorder %s20, 4
    %s27 = sphi 0, %s39
    %s28 = sphi 0, %s35
    %s29 = sphi 0, %s27
    %s30 = sphi 0, %s28
    %s31 = sphi 0, %s29
    %s32 = sphi 0, %s30
    %s44 = sphi 0, %s46
    %s47 = sphi 0, %s44
    %s48 = sphi 0, %s47
    %s64 = sphi 0, %s48
    %s72 = sphi 0, %s74
    %s75 = sphi 0, %s72
    %s76 = sphi 0, %s75
    %s92 = sphi 0, %s76
    %s98 = sphi 0, %s100
    %s101 = sphi 0, %s98
    %s102 = sphi 0, %s101
    %s118 = sphi 0, %s102
    %s122 = sphi 0, %s122
    %s124 = sphi 0, %s122
    %s125 = sphi 0, %s124
    %s139 = sphi 0, %s125
    %s143 = sphi 0, %s143
    %s145 = sphi 0, %s143
    %s146 = sphi 0, %s145
    %s160 = sphi 0, %s146
    %s164 = sphi 0, %s164
    %s166 = sphi 0, %s164
    %s167 = sphi 0, %s166
    %s181 = sphi 0, %s167
    %s185 = sphi 0, %s185
    %s187 = sphi 0, %s185
    %s188 = sphi 0, %s187
    %s202 = sphi 0, %s188
    %s206 = sphi 0, %s206
    %s208 = sphi 0, %s206
    %s209 = sphi 0, %s208
    %s223 = sphi 0, %s209
    %s227 = sphi 0, %s227
    %s229 = sphi 0, %s227
    %s230 = sphi 0, %s229
    %s244 = sphi 0, %s230
    %s248 = sphi 0, %s248
    %s250 = sphi 0, %s248
    %s251 = sphi 0, %s250
    %s265 = sphi 0, %s251
    %s269 = sphi 0, %s269
    %s271 = sphi 0, %s269
    %s272 = sphi 0, %s271
    %s286 = sphi 0, %s272
    %s290 = sphi 0, %s290
    %s292 = sphi 0, %s290
    %s293 = sphi 0, %s292
    %s307 = sphi 0, %s293
    %s315 = sphi 0, %s317
    %s318 = sphi 0, %s315
    %s319 = sphi 0, %s318
    %s335 = sphi 0, %s319
  $region4: #{up_forward.5} parent=0 // loop_header_branch
    %23 = sbr.rel (%p21) target = $region8
  $region5: #{up_forward.5} parent=0 // loop_body
    %s25 = ssub.s32 %s20, 1
    %s26 = ssub.s32 %s20, 2
    %s33 = sadd.s32 1, %s28
    %p34 = scmp.ge.s32.totalorder %s33, 1
    %s35 = scalar_select %p34, 0, %s33
    %s36 = sadd.s32 1, %s27
    %s37 = scalar_select %p34, %s36, %s27
    %p38 = scmp.ge.s32.totalorder %s37, 2
    %s39 = scalar_select %p38, 0, %s37
    %s40 = ssub.s32 %s27, %s39
    %s41 = ssub.s32 %s28, %s35
    %s42 = sor.u32 %s40, %s41
    %p43 = scmp.eq.s32.totalorder %s42, 0
    %s45 = sadd.s32 %s44, 1
    %s46 = scalar_select %p43, %s44, %s45
    %p49 = pneg %p43
    %p50 = scmp.eq.s32.totalorder %s20, 1
    %p51 = por %p49, %p50
    %p52 = scmp.ne.s32.totalorder %s44, %s47
    %p53 = scmp.eq.s32.totalorder %s20, 0
    %p54 = por %p52, %p53
    %p55 = scmp.ne.s32.totalorder %s44, %s47
    %p56 = scmp.eq.s32.totalorder %s25, 1
    %p57 = por %p55, %p56
    %p58 = scmp.ne.s32.totalorder %s47, %s48
    %p59 = scmp.eq.s32.totalorder %s25, 0
    %p60 = por %p58, %p59
    %p61 = scmp.ne.s32.totalorder %s47, %s48
    %p62 = scmp.eq.s32.totalorder %s26, 1
    %p63 = por %p61, %p62
    %p65 = scmp.ne.s32.totalorder %s48, %s64
    %p66 = scmp.eq.s32.totalorder %s26, 0
    %p67 = por %p65, %p66
    %s68 = ssub.s32 %s27, %s39
    %s69 = ssub.s32 %s28, %s35
    %s70 = sor.u32 %s68, %s69
    %p71 = scmp.eq.s32.totalorder %s70, 0
    %s73 = sadd.s32 %s72, 1
    %s74 = scalar_select %p71, %s72, %s73
    %p77 = pneg %p71
    %p78 = scmp.eq.s32.totalorder %s20, 1
    %p79 = por %p77, %p78
    %p80 = scmp.ne.s32.totalorder %s72, %s75
    %p81 = scmp.eq.s32.totalorder %s20, 0
    %p82 = por %p80, %p81
    %p83 = scmp.ne.s32.totalorder %s72, %s75
    %p84 = scmp.eq.s32.totalorder %s25, 1
    %p85 = por %p83, %p84
    %p86 = scmp.ne.s32.totalorder %s75, %s76
    %p87 = scmp.eq.s32.totalorder %s25, 0
    %p88 = por %p86, %p87
    %p89 = scmp.ne.s32.totalorder %s75, %s76
    %p90 = scmp.eq.s32.totalorder %s26, 1
    %p91 = por %p89, %p90
    %p93 = scmp.ne.s32.totalorder %s76, %s92
    %p94 = scmp.eq.s32.totalorder %s26, 0
    %p95 = por %p93, %p94
    %s96 = ssub.s32 %s27, %s39
    %p97 = scmp.eq.s32.totalorder %s96, 0
    %s99 = sadd.s32 %s98, 1
    %s100 = scalar_select %p97, %s98, %s99
    %p103 = pneg %p97
    %p104 = scmp.eq.s32.totalorder %s20, 1
    %p105 = por %p103, %p104
    %p106 = scmp.ne.s32.totalorder %s98, %s101
    %p107 = scmp.eq.s32.totalorder %s20, 0
    %p108 = por %p106, %p107
    %p109 = scmp.ne.s32.totalorder %s98, %s101
    %p110 = scmp.eq.s32.totalorder %s25, 1
    %p111 = por %p109, %p110
    %p112 = scmp.ne.s32.totalorder %s101, %s102
    %p113 = scmp.eq.s32.totalorder %s25, 0
    %p114 = por %p112, %p113
    %p115 = scmp.ne.s32.totalorder %s101, %s102
    %p116 = scmp.eq.s32.totalorder %s26, 1
    %p117 = por %p115, %p116
    %p119 = scmp.ne.s32.totalorder %s102, %s118
    %p120 = scmp.eq.s32.totalorder %s26, 0
    %p121 = por %p119, %p120
    %s123 = sadd.s32 %s122, 1
    %p126 = scmp.eq.s32.totalorder %s20, 1
    %p127 = scmp.ne.s32.totalorder %s122, %s124
    %p128 = scmp.eq.s32.totalorder %s20, 0
    %p129 = por %p127, %p128
    %p130 = scmp.ne.s32.totalorder %s122, %s124
    %p131 = scmp.eq.s32.totalorder %s25, 1
    %p132 = por %p130, %p131
    %p133 = scmp.ne.s32.totalorder %s124, %s125
    %p134 = scmp.eq.s32.totalorder %s25, 0
    %p135 = por %p133, %p134
    %p136 = scmp.ne.s32.totalorder %s124, %s125
    %p137 = scmp.eq.s32.totalorder %s26, 1
    %p138 = por %p136, %p137
    %p140 = scmp.ne.s32.totalorder %s125, %s139
    %p141 = scmp.eq.s32.totalorder %s26, 0
    %p142 = por %p140, %p141
    %s144 = sadd.s32 %s143, 1
    %p147 = scmp.eq.s32.totalorder %s20, 1
    %p148 = scmp.ne.s32.totalorder %s143, %s145
    %p149 = scmp.eq.s32.totalorder %s20, 0
    %p150 = por %p148, %p149
    %p151 = scmp.ne.s32.totalorder %s143, %s145
    %p152 = scmp.eq.s32.totalorder %s25, 1
    %p153 = por %p151, %p152
    %p154 = scmp.ne.s32.totalorder %s145, %s146
    %p155 = scmp.eq.s32.totalorder %s25, 0
    %p156 = por %p154, %p155
    %p157 = scmp.ne.s32.totalorder %s145, %s146
    %p158 = scmp.eq.s32.totalorder %s26, 1
    %p159 = por %p157, %p158
    %p161 = scmp.ne.s32.totalorder %s146, %s160
    %p162 = scmp.eq.s32.totalorder %s26, 0
    %p163 = por %p161, %p162
    %s165 = sadd.s32 %s164, 1
    %p168 = scmp.eq.s32.totalorder %s20, 1
    %p169 = scmp.ne.s32.totalorder %s164, %s166
    %p170 = scmp.eq.s32.totalorder %s20, 0
    %p171 = por %p169, %p170
    %p172 = scmp.ne.s32.totalorder %s164, %s166
    %p173 = scmp.eq.s32.totalorder %s25, 1
    %p174 = por %p172, %p173
    %p175 = scmp.ne.s32.totalorder %s166, %s167
    %p176 = scmp.eq.s32.totalorder %s25, 0
    %p177 = por %p175, %p176
    %p178 = scmp.ne.s32.totalorder %s166, %s167
    %p179 = scmp.eq.s32.totalorder %s26, 1
    %p180 = por %p178, %p179
    %p182 = scmp.ne.s32.totalorder %s167, %s181
    %p183 = scmp.eq.s32.totalorder %s26, 0
    %p184 = por %p182, %p183
    %s186 = sadd.s32 %s185, 1
    %p189 = scmp.eq.s32.totalorder %s20, 1
    %p190 = scmp.ne.s32.totalorder %s185, %s187
    %p191 = scmp.eq.s32.totalorder %s20, 0
    %p192 = por %p190, %p191
    %p193 = scmp.ne.s32.totalorder %s185, %s187
    %p194 = scmp.eq.s32.totalorder %s25, 1
    %p195 = por %p193, %p194
    %p196 = scmp.ne.s32.totalorder %s187, %s188
    %p197 = scmp.eq.s32.totalorder %s25, 0
    %p198 = por %p196, %p197
    %p199 = scmp.ne.s32.totalorder %s187, %s188
    %p200 = scmp.eq.s32.totalorder %s26, 1
    %p201 = por %p199, %p200
    %p203 = scmp.ne.s32.totalorder %s188, %s202
    %p204 = scmp.eq.s32.totalorder %s26, 0
    %p205 = por %p203, %p204
    %s207 = sadd.s32 %s206, 1
    %p210 = scmp.eq.s32.totalorder %s20, 1
    %p211 = scmp.ne.s32.totalorder %s206, %s208
    %p212 = scmp.eq.s32.totalorder %s20, 0
    %p213 = por %p211, %p212
    %p214 = scmp.ne.s32.totalorder %s206, %s208
    %p215 = scmp.eq.s32.totalorder %s25, 1
    %p216 = por %p214, %p215
    %p217 = scmp.ne.s32.totalorder %s208, %s209
    %p218 = scmp.eq.s32.totalorder %s25, 0
    %p219 = por %p217, %p218
    %p220 = scmp.ne.s32.totalorder %s208, %s209
    %p221 = scmp.eq.s32.totalorder %s26, 1
    %p222 = por %p220, %p221
    %p224 = scmp.ne.s32.totalorder %s209, %s223
    %p225 = scmp.eq.s32.totalorder %s26, 0
    %p226 = por %p224, %p225
    %s228 = sadd.s32 %s227, 1
    %p231 = scmp.eq.s32.totalorder %s20, 1
    %p232 = scmp.ne.s32.totalorder %s227, %s229
    %p233 = scmp.eq.s32.totalorder %s20, 0
    %p234 = por %p232, %p233
    %p235 = scmp.ne.s32.totalorder %s227, %s229
    %p236 = scmp.eq.s32.totalorder %s25, 1
    %p237 = por %p235, %p236
    %p238 = scmp.ne.s32.totalorder %s229, %s230
    %p239 = scmp.eq.s32.totalorder %s25, 0
    %p240 = por %p238, %p239
    %p241 = scmp.ne.s32.totalorder %s229, %s230
    %p242 = scmp.eq.s32.totalorder %s26, 1
    %p243 = por %p241, %p242
    %p245 = scmp.ne.s32.totalorder %s230, %s244
    %p246 = scmp.eq.s32.totalorder %s26, 0
    %p247 = por %p245, %p246
    %s249 = sadd.s32 %s248, 1
    %p252 = scmp.eq.s32.totalorder %s20, 1
    %p253 = scmp.ne.s32.totalorder %s248, %s250
    %p254 = scmp.eq.s32.totalorder %s20, 0
    %p255 = por %p253, %p254
    %p256 = scmp.ne.s32.totalorder %s248, %s250
    %p257 = scmp.eq.s32.totalorder %s25, 1
    %p258 = por %p256, %p257
    %p259 = scmp.ne.s32.totalorder %s250, %s251
    %p260 = scmp.eq.s32.totalorder %s25, 0
    %p261 = por %p259, %p260
    %p262 = scmp.ne.s32.totalorder %s250, %s251
    %p263 = scmp.eq.s32.totalorder %s26, 1
    %p264 = por %p262, %p263
    %p266 = scmp.ne.s32.totalorder %s251, %s265
    %p267 = scmp.eq.s32.totalorder %s26, 0
    %p268 = por %p266, %p267
    %s270 = sadd.s32 %s269, 1
    %p273 = scmp.eq.s32.totalorder %s20, 1
    %p274 = scmp.ne.s32.totalorder %s269, %s271
    %p275 = scmp.eq.s32.totalorder %s20, 0
    %p276 = por %p274, %p275
    %p277 = scmp.ne.s32.totalorder %s269, %s271
    %p278 = scmp.eq.s32.totalorder %s25, 1
    %p279 = por %p277, %p278
    %p280 = scmp.ne.s32.totalorder %s271, %s272
    %p281 = scmp.eq.s32.totalorder %s25, 0
    %p282 = por %p280, %p281
    %p283 = scmp.ne.s32.totalorder %s271, %s272
    %p284 = scmp.eq.s32.totalorder %s26, 1
    %p285 = por %p283, %p284
    %p287 = scmp.ne.s32.totalorder %s272, %s286
    %p288 = scmp.eq.s32.totalorder %s26, 0
    %p289 = por %p287, %p288
    %s291 = sadd.s32 %s290, 1
    %p294 = scmp.eq.s32.totalorder %s20, 1
    %p295 = scmp.ne.s32.totalorder %s290, %s292
    %p296 = scmp.eq.s32.totalorder %s20, 0
    %p297 = por %p295, %p296
    %p298 = scmp.ne.s32.totalorder %s290, %s292
    %p299 = scmp.eq.s32.totalorder %s25, 1
    %p300 = por %p298, %p299
    %p301 = scmp.ne.s32.totalorder %s292, %s293
    %p302 = scmp.eq.s32.totalorder %s25, 0
    %p303 = por %p301, %p302
    %p304 = scmp.ne.s32.totalorder %s292, %s293
    %p305 = scmp.eq.s32.totalorder %s26, 1
    %p306 = por %p304, %p305
    %p308 = scmp.ne.s32.totalorder %s293, %s307
    %p309 = scmp.eq.s32.totalorder %s26, 0
    %p310 = por %p308, %p309
    %s311 = ssub.s32 %s27, %s39
    %s312 = ssub.s32 %s28, %s35
    %s313 = sor.u32 %s311, %s312
    %p314 = scmp.eq.s32.totalorder %s313, 0
    %s316 = sadd.s32 %s315, 1
    %s317 = scalar_select %p314, %s315, %s316
    %p320 = pneg %p314
    %p321 = scmp.eq.s32.totalorder %s20, 1
    %p322 = por %p320, %p321
    %p323 = scmp.ne.s32.totalorder %s315, %s318
    %p324 = scmp.eq.s32.totalorder %s20, 0
    %p325 = por %p323, %p324
    %p326 = scmp.ne.s32.totalorder %s315, %s318
    %p327 = scmp.eq.s32.totalorder %s25, 1
    %p328 = por %p326, %p327
    %p329 = scmp.ne.s32.totalorder %s318, %s319
    %p330 = scmp.eq.s32.totalorder %s25, 0
    %p331 = por %p329, %p330
    %p332 = scmp.ne.s32.totalorder %s318, %s319
    %p333 = scmp.eq.s32.totalorder %s26, 1
    %p334 = por %p332, %p333
    %p336 = scmp.ne.s32.totalorder %s319, %s335
    %p337 = scmp.eq.s32.totalorder %s26, 0
    %p338 = por %p336, %p337
    %p339 = scmp.le.s32.totalorder 1, %s20
    %p340 = scmp.lt.s32.totalorder %s20, 3
    %p341 = pnand %p339, %p340
    %p342 = pneg %p341
    // Predicated region
    $region9: #{up_forward.5} parent=5 // pred_check
      _
    $region10: #{up_forward.5} parent=5 // pred_check_branch
      %344 = sbr.rel (%p341) target = $region12
    $region11: #{up_forward.5} parent=5 // pred_region
      %s345 = ssub.s32 %s20, 1
      // Predicated region
      $region13: #{up_forward.5} parent=11 // pred_check
        %p346 = pneg %p135
      $region14: #{up_forward.5} parent=11 // pred_check_branch
        %348 = sbr.rel (%p346) target = $region16
      $region15: #{up_forward.5} parent=11 // pred_region
        _
      $region16: #{up_forward.5} parent=11 // pred_fallthru
        _
      // Predicated region
      $region17: #{up_forward.5} parent=11 // pred_check
        %p349 = pneg %p156
      $region18: #{up_forward.5} parent=11 // pred_check_branch
        %351 = sbr.rel (%p349) target = $region20
      $region19: #{up_forward.5} parent=11 // pred_region
        _
      $region20: #{up_forward.5} parent=11 // pred_fallthru
        _
      // Predicated region
      $region21: #{up_forward.5} parent=11 // pred_check
        %p352 = pneg %p177
      $region22: #{up_forward.5} parent=11 // pred_check_branch
        %354 = sbr.rel (%p352) target = $region24
      $region23: #{up_forward.5} parent=11 // pred_region
        _
      $region24: #{up_forward.5} parent=11 // pred_fallthru
        _
      // Predicated region
      $region25: #{up_forward.5} parent=11 // pred_check
        %p355 = pneg %p198
      $region26: #{up_forward.5} parent=11 // pred_check_branch
        %357 = sbr.rel (%p355) target = $region28
      $region27: #{up_forward.5} parent=11 // pred_region
        _
      $region28: #{up_forward.5} parent=11 // pred_fallthru
        _
      // Predicated region
      $region29: #{up_forward.5} parent=11 // pred_check
        %p358 = pneg %p219
      $region30: #{up_forward.5} parent=11 // pred_check_branch
        %360 = sbr.rel (%p358) target = $region32
      $region31: #{up_forward.5} parent=11 // pred_region
        _
      $region32: #{up_forward.5} parent=11 // pred_fallthru
        _
      // Predicated region
      $region33: #{up_forward.5} parent=11 // pred_check
        %p361 = pneg %p240
      $region34: #{up_forward.5} parent=11 // pred_check_branch
        %363 = sbr.rel (%p361) target = $region36
      $region35: #{up_forward.5} parent=11 // pred_region
        _
      $region36: #{up_forward.5} parent=11 // pred_fallthru
        _
      // Predicated region
      $region37: #{up_forward.5} parent=11 // pred_check
        %p364 = pneg %p261
      $region38: #{up_forward.5} parent=11 // pred_check_branch
        %366 = sbr.rel (%p364) target = $region40
      $region39: #{up_forward.5} parent=11 // pred_region
        _
      $region40: #{up_forward.5} parent=11 // pred_fallthru
        _
      // Predicated region
      $region41: #{up_forward.5} parent=11 // pred_check
        %p367 = pneg %p282
      $region42: #{up_forward.5} parent=11 // pred_check_branch
        %369 = sbr.rel (%p367) target = $region44
      $region43: #{up_forward.5} parent=11 // pred_region
        _
      $region44: #{up_forward.5} parent=11 // pred_fallthru
        _
      // Predicated region
      $region45: #{up_forward.5} parent=11 // pred_check
        %p370 = pneg %p303
      $region46: #{up_forward.5} parent=11 // pred_check_branch
        %372 = sbr.rel (%p370) target = $region48
      $region47: #{up_forward.5} parent=11 // pred_region
        _
      $region48: #{up_forward.5} parent=11 // pred_fallthru
        _
    $region12: #{up_forward.5} parent=5 // pred_fallthru
      _
    %p373 = scmp.lt.s32.totalorder %s20, 2
    // Predicated region
    $region49: #{up_forward.5} parent=5 // pred_check
      %p374 = pneg %p373
    $region50: #{up_forward.5} parent=5 // pred_check_branch
      %376 = sbr.rel (%p374) target = $region52
    $region51: #{up_forward.5} parent=5 // pred_region
      // Predicated region
      $region53: #{up_forward.5} parent=51 // pred_check
        %p377 = pneg %p54
      $region54: #{up_forward.5} parent=51 // pred_check_branch
        %379 = sbr.rel (%p377) target = $region56
      $region55: #{up_forward.5} parent=51 // pred_region
        %s380 = smul.u32 4, %s28
        %p381 = scmp.lt.s32.totalorder %s27, 1
        %s382 = scalar_select %p381, %s27, 1
        %p383 = scmp.lt.s32.totalorder %s380, 3
        %s384 = scalar_select %p383, %s380, 3
        %s385 = smul.addr %s382, 4
        %s386 = sadd.s32 %s384, %s385
        %s387 = smul.addr %s386, 4
        %s388 = scalar_lea.vmem %s0, %s387
        %s389 = smul.u32 4, %s28
      $region56: #{up_forward.5} parent=51 // pred_fallthru
        _
      // Predicated region
      $region57: #{up_forward.5} parent=51 // pred_check
        %p390 = pneg %p82
      $region58: #{up_forward.5} parent=51 // pred_check_branch
        %392 = sbr.rel (%p390) target = $region60
      $region59: #{up_forward.5} parent=51 // pred_region
        %s393 = smul.u32 4, %s28
        %p394 = scmp.lt.s32.totalorder %s27, 1
        %s395 = scalar_select %p394, %s27, 1
        %p396 = scmp.lt.s32.totalorder %s393, 3
        %s397 = scalar_select %p396, %s393, 3
        %s398 = smul.addr %s395, 4
        %s399 = sadd.s32 %s397, %s398
        %s400 = smul.addr %s399, 4
        %s401 = scalar_lea.vmem %s1, %s400
        %s402 = smul.u32 4, %s28
      $region60: #{up_forward.5} parent=51 // pred_fallthru
        _
      // Predicated region
      $region61: #{up_forward.5} parent=51 // pred_check
        %p403 = pneg %p108
      $region62: #{up_forward.5} parent=51 // pred_check_branch
        %405 = sbr.rel (%p403) target = $region64
      $region63: #{up_forward.5} parent=51 // pred_region
        %p406 = scmp.lt.s32.totalorder %s27, 1
        %s407 = scalar_select %p406, %s27, 1
        %s408 = smul.addr %s407, 4
        %s409 = scalar_lea.vmem %s2, %s408
      $region64: #{up_forward.5} parent=51 // pred_fallthru
        _
    $region52: #{up_forward.5} parent=5 // pred_fallthru
      _
    %p410 = scmp.le.s32.totalorder 1, %s20
    %p411 = scmp.lt.s32.totalorder %s20, 3
    %p412 = pnand %p410, %p411
    %p413 = pneg %p412
    // Predicated region
    $region65: #{up_forward.5} parent=5 // pred_check
      _
    $region66: #{up_forward.5} parent=5 // pred_check_branch
      %415 = sbr.rel (%p412) target = $region68
    $region67: #{up_forward.5} parent=5 // pred_region
      %s416 = ssub.s32 %s20, 1
      %s417 = smul.u32 4, %s30
      %p418 = scmp.lt.s32.totalorder %s29, 1
      %s419 = scalar_select %p418, %s29, 1
      %p420 = scmp.lt.s32.totalorder %s417, 3
      %s421 = scalar_select %p420, %s417, 3
      %s422 = smul.addr %s419, 4
      %s423 = sadd.s32 %s421, %s422
      %s424 = smul.addr %s423, 4
      %s425 = scalar_lea.vmem %s0, %s424
      %p426 = pneg %p60
      %p427 = pneg %p57
      %s428 = smul.u32 4, %s30
      %p429 = scmp.lt.s32.totalorder %s29, 1
      %s430 = scalar_select %p429, %s29, 1
      %p431 = scmp.lt.s32.totalorder %s428, 3
      %s432 = scalar_select %p431, %s428, 3
      %s433 = smul.addr %s430, 4
      %s434 = sadd.s32 %s432, %s433
      %s435 = smul.addr %s434, 4
      %s436 = scalar_lea.vmem %s1, %s435
      %p437 = pneg %p88
      %p438 = pneg %p85
      %p439 = scmp.lt.s32.totalorder %s29, 1
      %s440 = scalar_select %p439, %s29, 1
      %s441 = smul.addr %s440, 4
      %s442 = scalar_lea.vmem %s2, %s441
      %p443 = pneg %p114
      %p444 = pneg %p111
      %p445 = pneg %p135
      %p446 = pneg %p132
      %p447 = pneg %p156
      %p448 = pneg %p153
      %p449 = pneg %p177
      %p450 = pneg %p174
      %p451 = pneg %p198
      %p452 = pneg %p195
      %p453 = pneg %p219
      %p454 = pneg %p216
      %p455 = pneg %p240
      %p456 = pneg %p237
      %p457 = pneg %p261
      %p458 = pneg %p258
      %p459 = pneg %p282
      %p460 = pneg %p279
      %p461 = pneg %p303
      %p462 = pneg %p300
      %p463 = pneg %p331
      %p464 = pneg %p328
      %s465 = smul.u32 4, %s30
      %p466 = scmp.lt.s32.totalorder %s29, 1
      %s467 = scalar_select %p466, %s29, 1
      %p468 = scmp.lt.s32.totalorder %s465, 3
      %s469 = scalar_select %p468, %s465, 3
      %s470 = smul.addr %s467, 4
      %s471 = sadd.s32 %s469, %s470
      %s472 = smul.addr %s471, 4
      %s473 = scalar_lea.vmem %s12, %s472
      %s474 = smul.u32 4, %s30
      %p475 = scmp.lt.s32.totalorder %s29, 1
      %s476 = scalar_select %p475, %s29, 1
      %p477 = scmp.lt.s32.totalorder %s474, 3
      %s478 = scalar_select %p477, %s474, 3
      %s479 = smul.addr %s476, 4
      %s480 = sadd.s32 %s478, %s479
      %s481 = smul.addr %s480, 4
      %s482 = scalar_lea.vmem %s0, %s481
      %s483 = smul.u32 4, %s30
      %s484 = smul.u32 4, %s30
      %p485 = scmp.lt.s32.totalorder %s29, 1
      %s486 = scalar_select %p485, %s29, 1
      %p487 = scmp.lt.s32.totalorder %s484, 3
      %s488 = scalar_select %p487, %s484, 3
      %s489 = smul.addr %s486, 4
      %s490 = sadd.s32 %s488, %s489
      %s491 = smul.addr %s490, 4
      %s492 = scalar_lea.vmem %s1, %s491
      %s493 = smul.u32 4, %s30
      %p494 = scmp.lt.s32.totalorder %s29, 1
      %s495 = scalar_select %p494, %s29, 1
      %s496 = smul.addr %s495, 4
      %s497 = scalar_lea.vmem %s2, %s496
      %s498 = smul.u32 4, %s30
      %p499 = scmp.lt.s32.totalorder %s29, 1
      %s500 = scalar_select %p499, %s29, 1
      %p501 = scmp.lt.s32.totalorder %s498, 3
      %s502 = scalar_select %p501, %s498, 3
      %s503 = smul.addr %s500, 4
      %s504 = sadd.s32 %s502, %s503
      %s505 = smul.addr %s504, 4
      %s506 = scalar_lea.vmem %s12, %s505
      %s507 = smul.u32 4, %s30
      %v508 = vld [vmem:[%s482] sm:$0xff]
      %v509 = vld [vmem:[%s482 + $0x8] sm:$0xff]
      %v510 = vld [vmem:[%s492] sm:$0xff]
      %v511 = vld [vmem:[%s492 + $0x8] sm:$0xff]
      %v512 = vld [vmem:[%s497] sm:$0xf]
      %514 = vset.pattern.permute.xlu0 0
      %515 = vperm.xlu0 %514, %v512
      %v516 = vpop.permute.xlu0 %515
      %v520 = vcombine.high %v508, %v508
      %v521 = vcombine.high %v509, %v509
      %v524 = vmul.f32 %v516, %v508
      %v525 = vmul.f32 %v516, %v520
      %v526 = vmul.f32 %v516, %v509
      %v527 = vmul.f32 %v516, %v521
      %vm528 = vcmask 1043456
      %v529 = vsel %vm528, %v524, 0.0
      %v530 = vrot.slane %v529, 4
      %v531 = vadd.f32 %v529, %v530
      %v532 = vrot.slane %v531, 2
      %v533 = vadd.f32 %v531, %v532
      %v534 = vrot.slane %v533, 1
      %v535 = vadd.f32 %v533, %v534
      %v536 = vsel %vm528, %v525, 0.0
      %v537 = vrot.slane %v536, 4
      %v538 = vadd.f32 %v536, %v537
      %v539 = vrot.slane %v538, 2
      %v540 = vadd.f32 %v538, %v539
      %v541 = vrot.slane %v540, 1
      %v542 = vadd.f32 %v540, %v541
      %v543 = vsel %vm528, %v526, 0.0
      %v544 = vrot.slane %v543, 4
      %v545 = vadd.f32 %v543, %v544
      %v546 = vrot.slane %v545, 2
      %v547 = vadd.f32 %v545, %v546
      %v548 = vrot.slane %v547, 1
      %v549 = vadd.f32 %v547, %v548
      %v550 = vsel %vm528, %v527, 0.0
      %v551 = vrot.slane %v550, 4
      %v552 = vadd.f32 %v550, %v551
      %v553 = vrot.slane %v552, 2
      %v554 = vadd.f32 %v552, %v553
      %v555 = vrot.slane %v554, 1
      %v556 = vadd.f32 %v554, %v555
      %v557 = vrcp.pop 4.0
      %v558 = vmul.f32 %v535, %v557
      %v559 = vmul.f32 %v542, %v557
      %v560 = vmul.f32 %v549, %v557
      %v561 = vmul.f32 %v556, %v557
      %v562 = vsel %vm528, %v524, -inf
      %v563 = vrot.slane %v562, 4
      %v564 = vmax.f32 %v562, %v563
      %v565 = vrot.slane %v564, 2
      %v566 = vmax.f32 %v564, %v565
      %v567 = vrot.slane %v566, 1
      %v568 = vmax.f32 %v566, %v567
      %v569 = vsel %vm528, %v525, -inf
      %v570 = vrot.slane %v569, 4
      %v571 = vmax.f32 %v569, %v570
      %v572 = vrot.slane %v571, 2
      %v573 = vmax.f32 %v571, %v572
      %v574 = vrot.slane %v573, 1
      %v575 = vmax.f32 %v573, %v574
      %v576 = vsel %vm528, %v526, -inf
      %v577 = vrot.slane %v576, 4
      %v578 = vmax.f32 %v576, %v577
      %v579 = vrot.slane %v578, 2
      %v580 = vmax.f32 %v578, %v579
      %v581 = vrot.slane %v580, 1
      %v582 = vmax.f32 %v580, %v581
      %v583 = vsel %vm528, %v527, -inf
      %v584 = vrot.slane %v583, 4
      %v585 = vmax.f32 %v583, %v584
      %v586 = vrot.slane %v585, 2
      %v587 = vmax.f32 %v585, %v586
      %v588 = vrot.slane %v587, 1
      %v589 = vmax.f32 %v587, %v588
      %v590 = vld [vmem:[%s3] sm:$0x1]
      %592 = vset.pattern.permute.xlu0 0
      %593 = vperm.xlu0 %592, %v590
      %v594 = vpop.permute.xlu0 %593
      %v596 = vlaneseq
      %v597 = vshrl.u32 %v596, 7
      %v598 = vsub.s32 0, %v597
      %v599 = vrot.slane %v594, %v598
      %v600 = vmul.f32 %v558, %v599
      %v601 = vmul.f32 %v559, %v599
      %v602 = vmul.f32 %v560, %v599
      %v603 = vmul.f32 %v561, %v599
      %604 = vset.pattern.permute.xlu0 1
      %605 = vperm.xlu0 %604, %v590
      %v606 = vpop.permute.xlu0 %605
      %v608 = vlaneseq
      %v609 = vshrl.u32 %v608, 7
      %v610 = vsub.s32 0, %v609
      %v611 = vrot.slane %v606, %v610
      %v612 = vmul.f32 %v568, %v611
      %v613 = vmul.f32 %v575, %v611
      %v614 = vmul.f32 %v582, %v611
      %v615 = vmul.f32 %v589, %v611
      %v616 = vadd.f32 %v600, %v612
      %v617 = vadd.f32 %v601, %v613
      %v618 = vadd.f32 %v602, %v614
      %v619 = vadd.f32 %v603, %v615
      %v620 = vld [vmem:[#allocation2] sm:$0x1]
      %622 = vset.pattern.permute.xlu0 0
      %623 = vperm.xlu0 %622, %v620
      %v624 = vpop.permute.xlu0 %623
      %v626 = vlaneseq
      %v627 = vshrl.u32 %v626, 7
      %v628 = vsub.s32 0, %v627
      %v629 = vrot.slane %v624, %v628
      %v630 = vadd.f32 %v616, %v629
      %v631 = vadd.f32 %v617, %v629
      %v632 = vadd.f32 %v618, %v629
      %v633 = vadd.f32 %v619, %v629
      %v634 = vxor.u32 %v630, 2147483648
      %v635 = vxor.u32 %v631, 2147483648
      %v636 = vxor.u32 %v632, 2147483648
      %v637 = vxor.u32 %v633, 2147483648
      %v638 = vmul.f32 %v634, 1.442695
      %v639 = vpow.pop %v638
      %v640 = vmul.f32 %v635, 1.442695
      %v641 = vpow.pop %v640
      %v642 = vmul.f32 %v636, 1.442695
      %v643 = vpow.pop %v642
      %v644 = vmul.f32 %v637, 1.442695
      %v645 = vpow.pop %v644
      %v646 = vadd.f32 %v639, 1.0
      %v647 = vadd.f32 %v641, 1.0
      %v648 = vadd.f32 %v643, 1.0
      %v649 = vadd.f32 %v645, 1.0
      %v650 = vrcp.pop %v646
      %v651 = vmul.f32 1.0, %v650
      %v652 = vrcp.pop %v647
      %v653 = vmul.f32 1.0, %v652
      %v654 = vrcp.pop %v648
      %v655 = vmul.f32 1.0, %v654
      %v656 = vrcp.pop %v649
      %v657 = vmul.f32 1.0, %v656
      %v658 = vmul.f32 %v651, %v524
      %v659 = vmul.f32 %v653, %v525
      %v660 = vmul.f32 %v655, %v526
      %v661 = vmul.f32 %v657, %v527
      %v662 = vld [vmem:[%s5] sm:$0xf]
      %664 = vset.pattern.permute.xlu0 0
      %665 = vperm.xlu0 %664, %v662
      %v666 = vpop.permute.xlu0 %665
      %v668 = vmul.f32 %v658, %v666
      %v669 = vmul.f32 %v659, %v666
      %v670 = vmul.f32 %v660, %v666
      %v671 = vmul.f32 %v661, %v666
      %v672 = vld [vmem:[%s6] sm:$0xf]
      %674 = vset.pattern.permute.xlu0 0
      %675 = vperm.xlu0 %674, %v672
      %v676 = vpop.permute.xlu0 %675
      %v678 = vadd.f32 %v668, %v676
      %v679 = vadd.f32 %v669, %v676
      %v680 = vadd.f32 %v670, %v676
      %v681 = vadd.f32 %v671, %v676
      %vm682 = vcmp.ge.f32.partialorder %v678, 0.0
      %vm683 = vcmp.ge.f32.partialorder %v679, 0.0
      %vm684 = vcmp.ge.f32.partialorder %v680, 0.0
      %vm685 = vcmp.ge.f32.partialorder %v681, 0.0
      %v686 = vmul.f32 %v678, 0.01
      %v687 = vmul.f32 %v679, 0.01
      %v688 = vmul.f32 %v680, 0.01
      %v689 = vmul.f32 %v681, 0.01
      %v690 = vsel %vm682, %v678, %v686
      %v691 = vsel %vm683, %v679, %v687
      %v692 = vsel %vm684, %v680, %v688
      %v693 = vsel %vm685, %v681, %v689
      %v694 = vld [vmem:[%s7] sm:$0xf]
      %696 = vset.pattern.permute.xlu0 0
      %697 = vperm.xlu0 %696, %v694
      %v698 = vpop.permute.xlu0 %697
      %v700 = vunpack.c.l.s4 839922192
      %v701 = vunpack.c.0.s8 %v700
      %v702 = vlaneseq
      %v703 = vshrl.u32 %v702, 7
      %v704 = vsub.s32 %v701, %v703
      %v705 = vrot.slane %v698, %v704
      %v707 = vmul.f32 %v510, %v705
      %v708 = vmul.f32 %v511, %v705
      %v709 = vld [vmem:[%s8] sm:$0xf]
      %711 = vset.pattern.permute.xlu0 0
      %712 = vperm.xlu0 %711, %v709
      %v713 = vpop.permute.xlu0 %712
      %v715 = vunpack.c.l.s4 839922192
      %v716 = vunpack.c.0.s8 %v715
      %v717 = vlaneseq
      %v718 = vshrl.u32 %v717, 7
      %v719 = vsub.s32 %v716, %v718
      %v720 = vrot.slane %v713, %v719
      %v722 = vadd.f32 %v707, %v720
      %v723 = vadd.f32 %v708, %v720
      %vm724 = vcmp.ge.f32.partialorder %v722, 0.0
      %vm725 = vcmp.ge.f32.partialorder %v723, 0.0
      %v726 = vmul.f32 %v722, 0.01
      %v727 = vmul.f32 %v723, 0.01
      %v728 = vsel %vm724, %v722, %v726
      %v729 = vsel %vm725, %v723, %v727
      %v730 = vld [vmem:[%s9] sm:$0xf]
      %v731 = vld [vmem:[%s10] sm:$0xf]
      %v734 = vcombine.high %v728, %v728
      %v735 = vcombine.high %v729, %v729
      %vm736 = vcmask 31744
      %v738 = vsel %vm736, %v731, 0
      %v740 = vsel %vm528, %v728, 0
      %v742 = vsel %vm528, %v734, 0
      %v744 = vsel %vm528, %v729, 0
      %v746 = vsel %vm528, %v735, 0
      %748 = vmatprep.subr.mxu0 0.0
      %749 = vmatpush1.msra.mxu0 0.0
      %750 = vmatprep.subr.mxu0 0.0
      %751 = vmatpush1.msra.mxu0 0.0
      %752 = vmatprep.subr.mxu0 0.0
      %753 = vmatpush1.msra.mxu0 0.0
      %754 = vmatprep.subr.mxu0 0.0
      %755 = vmatpush1.msra.mxu0 0.0
      %756 = vmatprep.subr.mxu0 0.0
      %757 = vmatpush1.msra.mxu0 0.0
      %758 = vmatprep.subr.mxu0 0.0
      %759 = vmatpush1.msra.mxu0 0.0
      %760 = vmatprep.subr.mxu0 0.0
      %761 = vmatpush1.msra.mxu0 0.0
      %762 = vmatprep.subr.mxu0 0.0
      %763 = vmatpush1.msra.mxu0 0.0
      %764 = vmatprep.subr.mxu0 0.0
      %765 = vmatpush1.msra.mxu0 0.0
      %766 = vmatprep.subr.mxu0 0.0
      %767 = vmatpush1.msra.mxu0 0.0
      %768 = vmatprep.subr.mxu0 0.0
      %769 = vmatpush1.msra.mxu0 0.0
      %770 = vmatprep.subr.mxu0 0.0
      %771 = vmatpush1.msra.mxu0 0.0
      %772 = vmatprep.subr.mxu0 0.0
      %773 = vmatpush1.msra.mxu0 0.0
      %774 = vmatprep.subr.mxu0 0.0
      %775 = vmatpush1.msra.mxu0 0.0
      %776 = vmatprep.subr.mxu0 0.0
      %777 = vmatpush1.msra.mxu0 0.0
      %778 = vmatprep.subr.mxu0 %v742
      %779 = vmatpush1.msra.mxu0 %v740
      %780 = vmatprep.subr.mxu0 0.0
      %781 = vmatpush2.msra.mxu0 0.0
      %782 = vmatprep.subr.mxu0 0.0
      %783 = vmatpush2.msra.mxu0 0.0
      %784 = vmatprep.subr.mxu0 0.0
      %785 = vmatpush2.msra.mxu0 0.0
      %786 = vmatprep.subr.mxu0 0.0
      %787 = vmatpush2.msra.mxu0 0.0
      %788 = vmatprep.subr.mxu0 0.0
      %789 = vmatpush2.msra.mxu0 0.0
      %790 = vmatprep.subr.mxu0 0.0
      %791 = vmatpush2.msra.mxu0 0.0
      %792 = vmatprep.subr.mxu0 0.0
      %793 = vmatpush2.msra.mxu0 0.0
      %794 = vmatprep.subr.mxu0 0.0
      %795 = vmatpush2.msra.mxu0 0.0
      %796 = vmatprep.subr.mxu0 0.0
      %797 = vmatpush2.msra.mxu0 0.0
      %798 = vmatprep.subr.mxu0 0.0
      %799 = vmatpush2.msra.mxu0 0.0
      %800 = vmatprep.subr.mxu0 0.0
      %801 = vmatpush2.msra.mxu0 0.0
      %802 = vmatprep.subr.mxu0 0.0
      %803 = vmatpush2.msra.mxu0 0.0
      %804 = vmatprep.subr.mxu0 0.0
      %805 = vmatpush2.msra.mxu0 0.0
      %806 = vmatprep.subr.mxu0 0.0
      %807 = vmatpush2.msra.mxu0 0.0
      %808 = vmatprep.subr.mxu0 0.0
      %809 = vmatpush2.msra.mxu0 0.0
      %810 = vmatprep.subr.mxu0 0.0
      %811 = vmatpush2.msra.mxu0 0.0
      %812 = vmatprep.mubr.f32.mxu0 0.0
      %813 = vmatmul.mubr.f32.gmra.mxu0 %v738
      %v814 = vpop.f32.mrf.mxu0
      %v815 = vadd.f32 0.0, %v814
      %v816 = vpop.f32.mrf.mxu0
      %v817 = vadd.f32 0.0, %v816
      %818 = vdwg.mxu0
      %819 = vmatprep.subr.mxu0 0.0
      %820 = vmatpush1.msra.mxu0 0.0
      %821 = vmatprep.subr.mxu0 0.0
      %822 = vmatpush1.msra.mxu0 0.0
      %823 = vmatprep.subr.mxu0 0.0
      %824 = vmatpush1.msra.mxu0 0.0
      %825 = vmatprep.subr.mxu0 0.0
      %826 = vmatpush1.msra.mxu0 0.0
      %827 = vmatprep.subr.mxu0 0.0
      %828 = vmatpush1.msra.mxu0 0.0
      %829 = vmatprep.subr.mxu0 0.0
      %830 = vmatpush1.msra.mxu0 0.0
      %831 = vmatprep.subr.mxu0 0.0
      %832 = vmatpush1.msra.mxu0 0.0
      %833 = vmatprep.subr.mxu0 0.0
      %834 = vmatpush1.msra.mxu0 0.0
      %835 = vmatprep.subr.mxu0 0.0
      %836 = vmatpush1.msra.mxu0 0.0
      %837 = vmatprep.subr.mxu0 0.0
      %838 = vmatpush1.msra.mxu0 0.0
      %839 = vmatprep.subr.mxu0 0.0
      %840 = vmatpush1.msra.mxu0 0.0
      %841 = vmatprep.subr.mxu0 0.0
      %842 = vmatpush1.msra.mxu0 0.0
      %843 = vmatprep.subr.mxu0 0.0
      %844 = vmatpush1.msra.mxu0 0.0
      %845 = vmatprep.subr.mxu0 0.0
      %846 = vmatpush1.msra.mxu0 0.0
      %847 = vmatprep.subr.mxu0 0.0
      %848 = vmatpush1.msra.mxu0 0.0
      %849 = vmatprep.subr.mxu0 %v746
      %850 = vmatpush1.msra.mxu0 %v744
      %851 = vmatprep.subr.mxu0 0.0
      %852 = vmatpush2.msra.mxu0 0.0
      %853 = vmatprep.subr.mxu0 0.0
      %854 = vmatpush2.msra.mxu0 0.0
      %855 = vmatprep.subr.mxu0 0.0
      %856 = vmatpush2.msra.mxu0 0.0
      %857 = vmatprep.subr.mxu0 0.0
      %858 = vmatpush2.msra.mxu0 0.0
      %859 = vmatprep.subr.mxu0 0.0
      %860 = vmatpush2.msra.mxu0 0.0
      %861 = vmatprep.subr.mxu0 0.0
      %862 = vmatpush2.msra.mxu0 0.0
      %863 = vmatprep.subr.mxu0 0.0
      %864 = vmatpush2.msra.mxu0 0.0
      %865 = vmatprep.subr.mxu0 0.0
      %866 = vmatpush2.msra.mxu0 0.0
      %867 = vmatprep.subr.mxu0 0.0
      %868 = vmatpush2.msra.mxu0 0.0
      %869 = vmatprep.subr.mxu0 0.0
      %870 = vmatpush2.msra.mxu0 0.0
      %871 = vmatprep.subr.mxu0 0.0
      %872 = vmatpush2.msra.mxu0 0.0
      %873 = vmatprep.subr.mxu0 0.0
      %874 = vmatpush2.msra.mxu0 0.0
      %875 = vmatprep.subr.mxu0 0.0
      %876 = vmatpush2.msra.mxu0 0.0
      %877 = vmatprep.subr.mxu0 0.0
      %878 = vmatpush2.msra.mxu0 0.0
      %879 = vmatprep.subr.mxu0 0.0
      %880 = vmatpush2.msra.mxu0 0.0
      %881 = vmatprep.subr.mxu0 0.0
      %882 = vmatpush2.msra.mxu0 0.0
      %883 = vmatprep.mubr.f32.mxu0 0.0
      %884 = vmatmul.mubr.f32.gmra.mxu0 %v738
      %v885 = vpop.f32.mrf.mxu0
      %v886 = vadd.f32 0.0, %v885
      %v887 = vpop.f32.mrf.mxu0
      %v888 = vadd.f32 0.0, %v887
      %889 = vdwg.mxu0
      %v891 = vsel %vm736, %v730, 0
      %v894 = vsel %vm528, %v690, 0
      %v897 = vsel %vm528, %v691, 0
      %v900 = vsel %vm528, %v692, 0
      %v903 = vsel %vm528, %v693, 0
      %905 = vmatprep.subr.mxu0 0.0
      %906 = vmatpush1.msra.mxu0 0.0
      %907 = vmatprep.subr.mxu0 0.0
      %908 = vmatpush1.msra.mxu0 0.0
      %909 = vmatprep.subr.mxu0 0.0
      %910 = vmatpush1.msra.mxu0 0.0
      %911 = vmatprep.subr.mxu0 0.0
      %912 = vmatpush1.msra.mxu0 0.0
      %913 = vmatprep.subr.mxu0 0.0
      %914 = vmatpush1.msra.mxu0 0.0
      %915 = vmatprep.subr.mxu0 0.0
      %916 = vmatpush1.msra.mxu0 0.0
      %917 = vmatprep.subr.mxu0 0.0
      %918 = vmatpush1.msra.mxu0 0.0
      %919 = vmatprep.subr.mxu0 0.0
      %920 = vmatpush1.msra.mxu0 0.0
      %921 = vmatprep.subr.mxu0 0.0
      %922 = vmatpush1.msra.mxu0 0.0
      %923 = vmatprep.subr.mxu0 0.0
      %924 = vmatpush1.msra.mxu0 0.0
      %925 = vmatprep.subr.mxu0 0.0
      %926 = vmatpush1.msra.mxu0 0.0
      %927 = vmatprep.subr.mxu0 0.0
      %928 = vmatpush1.msra.mxu0 0.0
      %929 = vmatprep.subr.mxu0 0.0
      %930 = vmatpush1.msra.mxu0 0.0
      %931 = vmatprep.subr.mxu0 0.0
      %932 = vmatpush1.msra.mxu0 0.0
      %933 = vmatprep.subr.mxu0 0.0
      %934 = vmatpush1.msra.mxu0 0.0
      %935 = vmatprep.subr.mxu0 %v897
      %936 = vmatpush1.msra.mxu0 %v894
      %937 = vmatprep.subr.mxu0 0.0
      %938 = vmatpush2.msra.mxu0 0.0
      %939 = vmatprep.subr.mxu0 0.0
      %940 = vmatpush2.msra.mxu0 0.0
      %941 = vmatprep.subr.mxu0 0.0
      %942 = vmatpush2.msra.mxu0 0.0
      %943 = vmatprep.subr.mxu0 0.0
      %944 = vmatpush2.msra.mxu0 0.0
      %945 = vmatprep.subr.mxu0 0.0
      %946 = vmatpush2.msra.mxu0 0.0
      %947 = vmatprep.subr.mxu0 0.0
      %948 = vmatpush2.msra.mxu0 0.0
      %949 = vmatprep.subr.mxu0 0.0
      %950 = vmatpush2.msra.mxu0 0.0
      %951 = vmatprep.subr.mxu0 0.0
      %952 = vmatpush2.msra.mxu0 0.0
      %953 = vmatprep.subr.mxu0 0.0
      %954 = vmatpush2.msra.mxu0 0.0
      %955 = vmatprep.subr.mxu0 0.0
      %956 = vmatpush2.msra.mxu0 0.0
      %957 = vmatprep.subr.mxu0 0.0
      %958 = vmatpush2.msra.mxu0 0.0
      %959 = vmatprep.subr.mxu0 0.0
      %960 = vmatpush2.msra.mxu0 0.0
      %961 = vmatprep.subr.mxu0 0.0
      %962 = vmatpush2.msra.mxu0 0.0
      %963 = vmatprep.subr.mxu0 0.0
      %964 = vmatpush2.msra.mxu0 0.0
      %965 = vmatprep.subr.mxu0 0.0
      %966 = vmatpush2.msra.mxu0 0.0
      %967 = vmatprep.subr.mxu0 0.0
      %968 = vmatpush2.msra.mxu0 0.0
      %969 = vmatprep.mubr.f32.mxu0 0.0
      %970 = vmatmul.mubr.f32.gmra.mxu0 %v891
      %v971 = vpop.f32.mrf.mxu0
      %v972 = vadd.f32 %v815, %v971
      %v973 = vpop.f32.mrf.mxu0
      %v974 = vadd.f32 %v817, %v973
      %975 = vdwg.mxu0
      %976 = vmatprep.subr.mxu0 0.0
      %977 = vmatpush1.msra.mxu0 0.0
      %978 = vmatprep.subr.mxu0 0.0
      %979 = vmatpush1.msra.mxu0 0.0
      %980 = vmatprep.subr.mxu0 0.0
      %981 = vmatpush1.msra.mxu0 0.0
      %982 = vmatprep.subr.mxu0 0.0
      %983 = vmatpush1.msra.mxu0 0.0
      %984 = vmatprep.subr.mxu0 0.0
      %985 = vmatpush1.msra.mxu0 0.0
      %986 = vmatprep.subr.mxu0 0.0
      %987 = vmatpush1.msra.mxu0 0.0
      %988 = vmatprep.subr.mxu0 0.0
      %989 = vmatpush1.msra.mxu0 0.0
      %990 = vmatprep.subr.mxu0 0.0
      %991 = vmatpush1.msra.mxu0 0.0
      %992 = vmatprep.subr.mxu0 0.0
      %993 = vmatpush1.msra.mxu0 0.0
      %994 = vmatprep.subr.mxu0 0.0
      %995 = vmatpush1.msra.mxu0 0.0
      %996 = vmatprep.subr.mxu0 0.0
      %997 = vmatpush1.msra.mxu0 0.0
      %998 = vmatprep.subr.mxu0 0.0
      %999 = vmatpush1.msra.mxu0 0.0
      %1000 = vmatprep.subr.mxu0 0.0
      %1001 = vmatpush1.msra.mxu0 0.0
      %1002 = vmatprep.subr.mxu0 0.0
      %1003 = vmatpush1.msra.mxu0 0.0
      %1004 = vmatprep.subr.mxu0 0.0
      %1005 = vmatpush1.msra.mxu0 0.0
      %1006 = vmatprep.subr.mxu0 %v903
      %1007 = vmatpush1.msra.mxu0 %v900
      %1008 = vmatprep.subr.mxu0 0.0
      %1009 = vmatpush2.msra.mxu0 0.0
      %1010 = vmatprep.subr.mxu0 0.0
      %1011 = vmatpush2.msra.mxu0 0.0
      %1012 = vmatprep.subr.mxu0 0.0
      %1013 = vmatpush2.msra.mxu0 0.0
      %1014 = vmatprep.subr.mxu0 0.0
      %1015 = vmatpush2.msra.mxu0 0.0
      %1016 = vmatprep.subr.mxu0 0.0
      %1017 = vmatpush2.msra.mxu0 0.0
      %1018 = vmatprep.subr.mxu0 0.0
      %1019 = vmatpush2.msra.mxu0 0.0
      %1020 = vmatprep.subr.mxu0 0.0
      %1021 = vmatpush2.msra.mxu0 0.0
      %1022 = vmatprep.subr.mxu0 0.0
      %1023 = vmatpush2.msra.mxu0 0.0
      %1024 = vmatprep.subr.mxu0 0.0
      %1025 = vmatpush2.msra.mxu0 0.0
      %1026 = vmatprep.subr.mxu0 0.0
      %1027 = vmatpush2.msra.mxu0 0.0
      %1028 = vmatprep.subr.mxu0 0.0
      %1029 = vmatpush2.msra.mxu0 0.0
      %1030 = vmatprep.subr.mxu0 0.0
      %1031 = vmatpush2.msra.mxu0 0.0
      %1032 = vmatprep.subr.mxu0 0.0
      %1033 = vmatpush2.msra.mxu0 0.0
      %1034 = vmatprep.subr.mxu0 0.0
      %1035 = vmatpush2.msra.mxu0 0.0
      %1036 = vmatprep.subr.mxu0 0.0
      %1037 = vmatpush2.msra.mxu0 0.0
      %1038 = vmatprep.subr.mxu0 0.0
      %1039 = vmatpush2.msra.mxu0 0.0
      %1040 = vmatprep.mubr.f32.mxu0 0.0
      %1041 = vmatmul.mubr.f32.gmra.mxu0 %v891
      %v1042 = vpop.f32.mrf.mxu0
      %v1043 = vadd.f32 %v886, %v1042
      %v1044 = vpop.f32.mrf.mxu0
      %v1045 = vadd.f32 %v888, %v1044
      %1046 = vdwg.mxu0
      %v1047 = vld [vmem:[%s11] sm:$0xf]
      %1049 = vset.pattern.permute.xlu0 0
      %1050 = vperm.xlu0 %1049, %v1047
      %v1051 = vpop.permute.xlu0 %1050
      %v1053 = vadd.f32 %v972, %v1051
      %v1054 = vadd.f32 %v974, %v1051
      %v1055 = vadd.f32 %v1043, %v1051
      %v1056 = vadd.f32 %v1045, %v1051
      %v1061 = vcombine.low %v1053, %v1054
      %v1062 = vcombine.low %v1055, %v1056
      %1065 = vst [vmem:[%s506] sm:$0xff] %v1061
      %1066 = vst [vmem:[%s506 + $0x8] sm:$0xff] %v1062
      %s1067 = smul.u32 4, %s30
      %p1068 = scmp.lt.s32.totalorder %s29, 1
      %s1069 = scalar_select %p1068, %s29, 1
      %p1070 = scmp.lt.s32.totalorder %s1067, 3
      %s1071 = scalar_select %p1070, %s1067, 3
      %s1072 = smul.addr %s1069, 4
      %s1073 = sadd.s32 %s1071, %s1072
      %s1074 = smul.addr %s1073, 4
      %s1075 = scalar_lea.vmem %s12, %s1074
      // Predicated region
      $region69: #{up_forward.5} parent=67 // pred_check
        %p1076 = pneg %p328
      $region70: #{up_forward.5} parent=67 // pred_check_branch
        %1078 = sbr.rel (%p1076) target = $region72
      $region71: #{up_forward.5} parent=67 // pred_region
        %s1079 = smul.u32 4, %s30
      $region72: #{up_forward.5} parent=67 // pred_fallthru
        _
    $region68: #{up_forward.5} parent=5 // pred_fallthru
      _
    %p1080 = scmp.le.s32.totalorder 2, %s20
    // Predicated region
    $region73: #{up_forward.5} parent=5 // pred_check
      %p1081 = pneg %p1080
    $region74: #{up_forward.5} parent=5 // pred_check_branch
      %1083 = sbr.rel (%p1081) target = $region76
    $region75: #{up_forward.5} parent=5 // pred_region
      %s1084 = ssub.s32 %s20, 2
      // Predicated region
      $region77: #{up_forward.5} parent=75 // pred_check
        %p1085 = pneg %p334
      $region78: #{up_forward.5} parent=75 // pred_check_branch
        %1087 = sbr.rel (%p1085) target = $region80
      $region79: #{up_forward.5} parent=75 // pred_region
        %s1088 = smul.u32 4, %s32
        %p1089 = scmp.lt.s32.totalorder %s31, 1
        %s1090 = scalar_select %p1089, %s31, 1
        %p1091 = scmp.lt.s32.totalorder %s1088, 3
        %s1092 = scalar_select %p1091, %s1088, 3
        %s1093 = smul.addr %s1090, 4
        %s1094 = sadd.s32 %s1092, %s1093
        %s1095 = smul.addr %s1094, 4
        %s1096 = scalar_lea.vmem %s12, %s1095
      $region80: #{up_forward.5} parent=75 // pred_fallthru
        _
    $region76: #{up_forward.5} parent=5 // pred_fallthru
      _
  $region6: #{up_forward.5} parent=0 // loop_footer
    %s24 = sadd.s32 1, %s20
  $region7: #{up_forward.5} parent=0 // loop_footer_branch
    %19 = sbr.rel target = $region3
  $region8: #{up_forward.5} parent=0 // loop_exit
    _

</llo_original>
